<compile_context>
chip_gen: v5e
topology: v5e:2x2
jax: 0.10.0
libtpu: 0.0.40
codegen_flags: <defaults>
</compile_context>

<pallas_src>
import math

import jax
import jax.numpy as jnp
from jax import lax
from jax.experimental import pallas as pl
from jax.experimental.pallas import tpu as pltpu


def _lightning_chunk_kernel(s_ref, q_ref, k_ref, v_ref, o_ref,
                            kv_ref, mask_ref, qdec_ref, kdec_ref):
    """One (batch*head, chunk) grid step of chunked lightning attention.

    s_ref    : (G,)    f32 SMEM (scalar-prefetched per-(b,h) decay slopes)
    q/k/v/o  : (Tc, D) VMEM tiles of the current chunk
    kv_ref   : (D, D)  f32 scratch -- carried inter-chunk kv state
    mask_ref : (Tc,Tc) f32 scratch -- intra-chunk decay mask (chunk-invariant)
    qdec_ref : (Tc, 1) f32 scratch -- exp(-s * t')          (row decay for q)
    kdec_ref : (Tc, 1) f32 scratch -- exp(-s * (Tc - i'))   (row decay for k)
    """
    g = pl.program_id(0)
    c = pl.program_id(1)
    s_val = s_ref[g]
    tc = q_ref.shape[0]

    # Per-(b,h) init: zero the carried state and build the decay tables once.
    # They depend only on relative position, so every chunk reuses them.
    @pl.when(c == 0)
    def _():
        kv_ref[...] = jnp.zeros_like(kv_ref)
        t_idx = lax.broadcasted_iota(jnp.int32, (tc, tc), 0)
        i_idx = lax.broadcasted_iota(jnp.int32, (tc, tc), 1)
        dist = (t_idx - i_idx).astype(jnp.float32)
        # Clamp the exp argument (i > t entries do feed the exp before the select).
        decay = jnp.exp(-s_val * jnp.maximum(dist, 0.0))
        mask_ref[...] = jnp.where(t_idx >= i_idx, decay, 0.0)
        row = lax.broadcasted_iota(jnp.int32, (tc, 1), 0).astype(jnp.float32)
        qdec_ref[...] = jnp.exp(-s_val * row)
        kdec_ref[...] = jnp.exp(-s_val * (float(tc) - row))

    q = q_ref[...]
    k = k_ref[...]
    v = v_ref[...]
    kv = kv_ref[...]                                   # (D, D) f32 state S_c
    qdec = qdec_ref[...]                               # (Tc, 1)
    kdec = kdec_ref[...]                               # (Tc, 1)

    qb = q.astype(jnp.bfloat16)
    kb = k.astype(jnp.bfloat16)
    vb = v.astype(jnp.bfloat16)

    # Intra-chunk: (Q K^T * decay_mask) @ V   -- MXU, bf16 operands, f32 accumulation.
    scores = lax.dot_general(qb, kb, (((1,), (1,)), ((), ())),
                             preferred_element_type=jnp.float32)       # (Tc, Tc)
    weighted = (scores * mask_ref[...]).astype(jnp.bfloat16)
    intra = jnp.dot(weighted, vb, preferred_element_type=jnp.float32)  # (Tc, D)

    # Inter-chunk: exp(-s*t') * (Q @ S_c)
    inter = qdec * jnp.dot(qb, kv.astype(jnp.bfloat16),
                           preferred_element_type=jnp.float32)         # (Tc, D)

    o_ref[...] = (intra + inter).astype(o_ref.dtype)

    # State update: S_{c+1} = exp(-s*Tc) * S_c + sum_i exp(-s*(Tc-i)) k_i v_i^T
    k_scaled = (kdec * k).astype(jnp.bfloat16)                          # (Tc, D)
    kv_add = lax.dot_general(k_scaled, vb, (((0,), (0,)), ((), ())),
                             preferred_element_type=jnp.float32)        # (D, D)
    block_decay = kdec_ref[0:1, 0:1]                                    # exp(-s*Tc)
    kv_ref[...] = block_decay * kv + kv_add


def lightning_attention(q, k, v, s, *, chunk=128):
    """o = lightning_attn_func(q, k, v, s).  q/k/v: (B, H, N, D), s: (H,)."""
    B, H, N, D = q.shape
    G = B * H
    # TODO(synk): handle ragged N (not divisible by chunk) via padding/BoundedSlice.
    tc = chunk if (N % chunk == 0 and N >= chunk) else N
    n_chunks = N // tc

    qf = q.reshape(G, N, D)
    kf = k.reshape(G, N, D)
    vf = v.reshape(G, N, D)
    s_g = jnp.broadcast_to(s.astype(jnp.float32)[None, :], (B, H)).reshape(G)

    # VMEM budget: 4 arrays x double-buffered (Tc, D) tiles + scratch, with headroom.
    itemsize = q.dtype.itemsize
    tile_bytes = tc * D * itemsize
    scratch_bytes = (D * D + tc * tc + 2 * tc * 128) * 4
    vmem_limit = max(2 * (4 * 2 * tile_bytes) + scratch_bytes + (4 << 20), 16 << 20)

    grid_spec = pltpu.PrefetchScalarGridSpec(
        num_scalar_prefetch=1,
        grid=(G, n_chunks),
        in_specs=[
            pl.BlockSpec((None, tc, D), lambda g, c, s_ref: (g, c, 0)),
            pl.BlockSpec((None, tc, D), lambda g, c, s_ref: (g, c, 0)),
            pl.BlockSpec((None, tc, D), lambda g, c, s_ref: (g, c, 0)),
        ],
        out_specs=pl.BlockSpec((None, tc, D), lambda g, c, s_ref: (g, c, 0)),
        scratch_shapes=[
            pltpu.VMEM((D, D), jnp.float32),     # carried kv state
            pltpu.VMEM((tc, tc), jnp.float32),   # intra-chunk decay mask
            pltpu.VMEM((tc, 1), jnp.float32),    # q row decay exp(-s*t')
            pltpu.VMEM((tc, 1), jnp.float32),    # k row decay exp(-s*(Tc-i'))
        ],
    )

    out = pl.pallas_call(
        _lightning_chunk_kernel,
        out_shape=jax.ShapeDtypeStruct((G, N, D), q.dtype),
        grid_spec=grid_spec,
        compiler_params=pltpu.CompilerParams(
            dimension_semantics=("parallel", "arbitrary"),
            vmem_limit_bytes=int(vmem_limit),
        ),
    )(s_g, qf, kf, vf)
    return out.reshape(B, H, N, D)


def build_slopes(n_heads):
    """Standard lightning-attention / ALiBi-style per-head decay slopes."""
    def p2(m):
        start = 2.0 ** (-(2.0 ** -(math.log2(m) - 3)))
        return [start * (start ** i) for i in range(m)]

    def slopes(m):
        if math.log2(m).is_integer():
            return p2(m)
        cp = 2 ** math.floor(math.log2(m))
        return p2(cp) + slopes(2 * cp)[0::2][: m - cp]

    return jnp.asarray(slopes(n_heads), dtype=jnp.float32)


def _reference(q, k, v, s):
    """Pure-JAX (XLA) reference of lightning_attn_func for a correctness check."""
    _, _, N, _ = q.shape
    idx = jnp.arange(N, dtype=jnp.float32)
    diff = idx[:, None] - idx[None, :]
    mask = jnp.where(diff >= 0,
                     jnp.exp(-s[:, None, None] * jnp.maximum(diff, 0.0)[None, :, :]),
                     0.0)
    scores = jnp.einsum("bhnd,bhmd->bhnm", q, k, precision=lax.Precision.HIGHEST)
    return jnp.einsum("bhnm,bhmd->bhnd", scores * mask[None], v,
                      precision=lax.Precision.HIGHEST)


if __name__ == "__main__":
    key = jax.random.PRNGKey(0)
    kq, kk, kv = jax.random.split(key, 3)

    # Small but representative: lane-dense D = 128, two chunks along the sequence.
    B, H, N, D = 2, 4, 256, 128
    q = jax.random.normal(kq, (B, H, N, D), dtype=jnp.float32)
    k = jax.random.normal(kk, (B, H, N, D), dtype=jnp.float32)
    v = jax.random.normal(kv, (B, H, N, D), dtype=jnp.float32)
    s = build_slopes(H)

    out = jax.block_until_ready(jax.jit(lightning_attention)(q, k, v, s))
    assert out.shape == (B, H, N, D) and out.dtype == jnp.float32
    assert bool(jnp.all(jnp.isfinite(out)))

    ref = jax.block_until_ready(jax.jit(_reference)(q, k, v, s))
    # bf16 MXU operands (f32 accumulation) -> expect ~1e-3 relative error vs f32 ref.
    rel_err = float(jnp.max(jnp.abs(out - ref)) / (jnp.max(jnp.abs(ref)) + 1e-6))
    assert rel_err < 2e-2, f"mismatch vs reference: rel_err={rel_err}"

    print("KERNEL_OK")
</pallas_src>

<mosaic_0001>
module attributes {stable_mosaic.version = 11 : i64} {
  func.func @_lightning_chunk_kernel(%arg0: i32, %arg1: i32, %arg2: memref<8xf32, #tpu.memory_space<smem>>, %arg3: memref<1x128x128xf32, #tpu.memory_space<vmem>>, %arg4: memref<1x128x128xf32, #tpu.memory_space<vmem>>, %arg5: memref<1x128x128xf32, #tpu.memory_space<vmem>>, %arg6: memref<1x128x128xf32, #tpu.memory_space<vmem>>, %arg7: memref<128x128xf32, #tpu.memory_space<vmem>>, %arg8: memref<128x128xf32, #tpu.memory_space<vmem>>, %arg9: memref<128x1xf32, #tpu.memory_space<vmem>>, %arg10: memref<128x1xf32, #tpu.memory_space<vmem>>) attributes {dimension_semantics = [#tpu.dimension_semantics<parallel>, #tpu.dimension_semantics<arbitrary>], iteration_bounds = array<i64: 8, 2>, scalar_prefetch = 1 : i64, scratch_operands = 4 : i64, tpu.core_type = #tpu.core_type<tc>, window_params = [{transform_indices = @transform_0, window_bounds = array<i64: 1, 128, 128>}, {transform_indices = @transform_1, window_bounds = array<i64: 1, 128, 128>}, {transform_indices = @transform_2, window_bounds = array<i64: 1, 128, 128>}, {transform_indices = @transform_3, window_bounds = array<i64: 1, 128, 128>}]} {
    %0 = arith.index_cast %arg0 : i32 to index
    %1 = memref.load %arg2[%0] : memref<8xf32, #tpu.memory_space<smem>>
    %c0_i32 = arith.constant 0 : i32
    %2 = arith.cmpi eq, %arg1, %c0_i32 : i32
    %3 = arith.extui %2 : i1 to i32
    %c0_i32_0 = arith.constant 0 : i32
    %4 = arith.cmpi ne, %3, %c0_i32_0 : i32
    scf.if %4 {
      %cst_27 = arith.constant 0.000000e+00 : f32
      %39 = vector.broadcast %cst_27 : f32 to vector<128x128xf32>
      %c0_28 = arith.constant 0 : index
      %c0_29 = arith.constant 0 : index
      %40 = vector.load %arg7[%c0_28, %c0_29] : memref<128x128xf32, #tpu.memory_space<vmem>>, vector<128x128xf32>
      tpu.vector_store %arg7[%c0_28, %c0_29], %39 {strides = array<i32>} : memref<128x128xf32, #tpu.memory_space<vmem>>, vector<128x128xf32>,
      %41 = tpu.iota {dimensions = array<i32: 0>} : vector<128x128xi32>
      %42 = tpu.iota {dimensions = array<i32: 1>} : vector<128x128xi32>
      %43 = arith.subi %41, %42 : vector<128x128xi32>
      %44 = arith.sitofp %43 : vector<128x128xi32> to vector<128x128xf32>
      %cst_30 = arith.constant 0.000000e+00 : f32
      %45 = arith.subf %cst_30, %1 : f32
      %cst_31 = arith.constant 0.000000e+00 : f32
      %46 = vector.broadcast %cst_31 : f32 to vector<128x128xf32>
      %47 = arith.maximumf %44, %46 : vector<128x128xf32>
      %48 = vector.broadcast %45 : f32 to vector<128x128xf32>
      %49 = arith.mulf %48, %47 : vector<128x128xf32>
      %50 = math.exp %49 : vector<128x128xf32>
      %51 = arith.cmpi sge, %41, %42 : vector<128x128xi32>
      %cst_32 = arith.constant 0.000000e+00 : f32
      %52 = vector.broadcast %cst_32 : f32 to vector<128x128xf32>
      %53 = arith.select %51, %50, %52 : vector<128x128xi1>, vector<128x128xf32>
      %c0_33 = arith.constant 0 : index
      %c0_34 = arith.constant 0 : index
      %54 = vector.load %arg8[%c0_33, %c0_34] : memref<128x128xf32, #tpu.memory_space<vmem>>, vector<128x128xf32>
      tpu.vector_store %arg8[%c0_33, %c0_34], %53 {strides = array<i32>} : memref<128x128xf32, #tpu.memory_space<vmem>>, vector<128x128xf32>,
      %55 = tpu.iota {dimensions = array<i32: 0>} : vector<128x1xi32>
      %56 = arith.sitofp %55 : vector<128x1xi32> to vector<128x1xf32>
      %cst_35 = arith.constant 0.000000e+00 : f32
      %57 = arith.subf %cst_35, %1 : f32
      %58 = vector.broadcast %57 : f32 to vector<128x1xf32>
      %59 = arith.mulf %58, %56 : vector<128x1xf32>
      %60 = math.exp %59 : vector<128x1xf32>
      %c0_36 = arith.constant 0 : index
      %c0_37 = arith.constant 0 : index
      %61 = vector.load %arg9[%c0_36, %c0_37] : memref<128x1xf32, #tpu.memory_space<vmem>>, vector<128x1xf32>
      tpu.vector_store %arg9[%c0_36, %c0_37], %60 {strides = array<i32>} : memref<128x1xf32, #tpu.memory_space<vmem>>, vector<128x1xf32>,
      %cst_38 = arith.constant 0.000000e+00 : f32
      %62 = arith.subf %cst_38, %1 : f32
      %cst_39 = arith.constant 1.280000e+02 : f32
      %63 = vector.broadcast %cst_39 : f32 to vector<128x1xf32>
      %64 = arith.subf %63, %56 : vector<128x1xf32>
      %65 = vector.broadcast %62 : f32 to vector<128x1xf32>
      %66 = arith.mulf %65, %64 : vector<128x1xf32>
      %67 = math.exp %66 : vector<128x1xf32>
      %c0_40 = arith.constant 0 : index
      %c0_41 = arith.constant 0 : index
      %68 = vector.load %arg10[%c0_40, %c0_41] : memref<128x1xf32, #tpu.memory_space<vmem>>, vector<128x1xf32>
      tpu.vector_store %arg10[%c0_40, %c0_41], %67 {strides = array<i32>} : memref<128x1xf32, #tpu.memory_space<vmem>>, vector<128x1xf32>,
    } else {
    }
    %c0 = arith.constant 0 : index
    %c0_1 = arith.constant 0 : index
    %c0_2 = arith.constant 0 : index
    %5 = vector.load %arg3[%c0, %c0_1, %c0_2] : memref<1x128x128xf32, #tpu.memory_space<vmem>>, vector<1x128x128xf32>
    %6 = vector.shape_cast %5 : vector<1x128x128xf32> to vector<128x128xf32>
    %c0_3 = arith.constant 0 : index
    %c0_4 = arith.constant 0 : index
    %c0_5 = arith.constant 0 : index
    %7 = vector.load %arg4[%c0_3, %c0_4, %c0_5] : memref<1x128x128xf32, #tpu.memory_space<vmem>>, vector<1x128x128xf32>
    %8 = vector.shape_cast %7 : vector<1x128x128xf32> to vector<128x128xf32>
    %c0_6 = arith.constant 0 : index
    %c0_7 = arith.constant 0 : index
    %c0_8 = arith.constant 0 : index
    %9 = vector.load %arg5[%c0_6, %c0_7, %c0_8] : memref<1x128x128xf32, #tpu.memory_space<vmem>>, vector<1x128x128xf32>
    %10 = vector.shape_cast %9 : vector<1x128x128xf32> to vector<128x128xf32>
    %c0_9 = arith.constant 0 : index
    %c0_10 = arith.constant 0 : index
    %11 = vector.load %arg7[%c0_9, %c0_10] : memref<128x128xf32, #tpu.memory_space<vmem>>, vector<128x128xf32>
    %c0_11 = arith.constant 0 : index
    %c0_12 = arith.constant 0 : index
    %12 = vector.load %arg9[%c0_11, %c0_12] : memref<128x1xf32, #tpu.memory_space<vmem>>, vector<128x1xf32>
    %c0_13 = arith.constant 0 : index
    %c0_14 = arith.constant 0 : index
    %13 = vector.load %arg10[%c0_13, %c0_14] : memref<128x1xf32, #tpu.memory_space<vmem>>, vector<128x1xf32>
    %14 = arith.truncf %6 : vector<128x128xf32> to vector<128x128xbf16>
    %15 = arith.truncf %8 : vector<128x128xf32> to vector<128x128xbf16>
    %16 = arith.truncf %10 : vector<128x128xf32> to vector<128x128xbf16>
    %cst = arith.constant dense<0.000000e+00> : vector<128x128xf32>
    %17 = tpu.matmul %14, %15, %cst {dimension_numbers = #tpu.dot_dimension_numbers<[1], [1], [0], [0], [0, 0, 1, 0], [], []>} : vector<128x128xbf16>, vector<128x128xbf16>, vector<128x128xf32> -> vector<128x128xf32>
    %c0_15 = arith.constant 0 : index
    %c0_16 = arith.constant 0 : index
    %18 = vector.load %arg8[%c0_15, %c0_16] : memref<128x128xf32, #tpu.memory_space<vmem>>, vector<128x128xf32>
    %19 = arith.mulf %17, %18 : vector<128x128xf32>
    %20 = arith.truncf %19 : vector<128x128xf32> to vector<128x128xbf16>
    %cst_17 = arith.constant dense<0.000000e+00> : vector<128x128xf32>
    %21 = tpu.matmul %20, %16, %cst_17 {dimension_numbers = #tpu.dot_dimension_numbers<[1], [0], [0], [1], [0, 0, 1, 1], [], []>} : vector<128x128xbf16>, vector<128x128xbf16>, vector<128x128xf32> -> vector<128x128xf32>
    %22 = arith.truncf %11 : vector<128x128xf32> to vector<128x128xbf16>
    %cst_18 = arith.constant dense<0.000000e+00> : vector<128x128xf32>
    %23 = tpu.matmul %14, %22, %cst_18 {dimension_numbers = #tpu.dot_dimension_numbers<[1], [0], [0], [1], [0, 0, 1, 1], [], []>} : vector<128x128xbf16>, vector<128x128xbf16>, vector<128x128xf32> -> vector<128x128xf32>
    %24 = vector.broadcast %12 : vector<128x1xf32> to vector<128x128xf32>
    %25 = arith.mulf %24, %23 : vector<128x128xf32>
    %26 = arith.addf %21, %25 : vector<128x128xf32>
    %c0_19 = arith.constant 0 : index
    %c0_20 = arith.constant 0 : index
    %c0_21 = arith.constant 0 : index
    %27 = vector.load %arg6[%c0_19, %c0_20, %c0_21] : memref<1x128x128xf32, #tpu.memory_space<vmem>>, vector<1x128x128xf32>
    %28 = vector.shape_cast %27 : vector<1x128x128xf32> to vector<128x128xf32>
    %29 = vector.shape_cast %26 : vector<128x128xf32> to vector<1x128x128xf32>
    tpu.vector_store %arg6[%c0_19, %c0_20, %c0_21], %29 {strides = array<i32>} : memref<1x128x128xf32, #tpu.memory_space<vmem>>, vector<1x128x128xf32>,
    %30 = vector.broadcast %13 : vector<128x1xf32> to vector<128x128xf32>
    %31 = arith.mulf %30, %8 : vector<128x128xf32>
    %32 = arith.truncf %31 : vector<128x128xf32> to vector<128x128xbf16>
    %cst_22 = arith.constant dense<0.000000e+00> : vector<128x128xf32>
    %33 = tpu.matmul %32, %16, %cst_22 {dimension_numbers = #tpu.dot_dimension_numbers<[0], [0], [1], [1], [0, 1, 1, 1], [], []>} : vector<128x128xbf16>, vector<128x128xbf16>, vector<128x128xf32> -> vector<128x128xf32>
    %c0_23 = arith.constant 0 : index
    %c0_24 = arith.constant 0 : index
    %34 = vector.load %arg10[%c0_23, %c0_24] : memref<128x1xf32, #tpu.memory_space<vmem>>, vector<1x1xf32>
    %35 = vector.broadcast %34 : vector<1x1xf32> to vector<128x128xf32>
    %36 = arith.mulf %35, %11 : vector<128x128xf32>
    %37 = arith.addf %36, %33 : vector<128x128xf32>
    %c0_25 = arith.constant 0 : index
    %c0_26 = arith.constant 0 : index
    %38 = vector.load %arg7[%c0_25, %c0_26] : memref<128x128xf32, #tpu.memory_space<vmem>>, vector<128x128xf32>
    tpu.vector_store %arg7[%c0_25, %c0_26], %37 {strides = array<i32>} : memref<128x128xf32, #tpu.memory_space<vmem>>, vector<128x128xf32>,
    return
  }
  func.func @transform_0(%arg0: i32, %arg1: i32, %arg2: memref<8xf32, #tpu.memory_space<smem>>) -> (i32, i32, i32) {
    %c0_i32 = arith.constant 0 : i32
    %c0_i32_0 = arith.constant 0 : i32
    return %arg0, %arg1, %c0_i32 : i32, i32, i32
  }
  func.func @transform_1(%arg0: i32, %arg1: i32, %arg2: memref<8xf32, #tpu.memory_space<smem>>) -> (i32, i32, i32) {
    %c0_i32 = arith.constant 0 : i32
    %c0_i32_0 = arith.constant 0 : i32
    return %arg0, %arg1, %c0_i32 : i32, i32, i32
  }
  func.func @transform_2(%arg0: i32, %arg1: i32, %arg2: memref<8xf32, #tpu.memory_space<smem>>) -> (i32, i32, i32) {
    %c0_i32 = arith.constant 0 : i32
    %c0_i32_0 = arith.constant 0 : i32
    return %arg0, %arg1, %c0_i32 : i32, i32, i32
  }
  func.func @transform_3(%arg0: i32, %arg1: i32, %arg2: memref<8xf32, #tpu.memory_space<smem>>) -> (i32, i32, i32) {
    %c0_i32 = arith.constant 0 : i32
    %c0_i32_0 = arith.constant 0 : i32
    return %arg0, %arg1, %c0_i32 : i32, i32, i32
  }
}

</mosaic_0001>

<llo_original>
// kernel: lightning_attention.1
$region0: #{lightning_attention.1}
  #allocation0 [shape = 'u32[]', space=smem, size = 0x4, offset = 0x4, fixed_abs, tag = 'smem constant byte address 0x4 - core index']
  #allocation1 [shape = 'u32[72,128]{1,0:T(1,128)}', space=vmem, size = 0x9000, scoped, tag = 'internal scratch']
  #allocation2 [shape = 'f32[128,128]{1,0:T(8,128)}', space=vmem, size = 0x10000, scoped, tag = 'scratch operand']
  #allocation3 [shape = 'f32[128,128]{1,0:T(8,128)}', space=vmem, size = 0x10000, scoped, tag = 'scratch operand']
  #allocation4 [shape = 'f32[128,1]{1,0:T(8,128)}', space=vmem, size = 0x10000, scoped, tag = 'scratch operand']
  #allocation5 [shape = 'f32[128,1]{1,0:T(8,128)}', space=vmem, size = 0x10000, scoped, tag = 'scratch operand']
  #allocation6 [shape = 's32[1]{0}', space=sflag, size = 0x4, scoped, tag = 'scoped memory for lightning_attention.1']
  #allocation7 [shape = 'u8[512]{0}', space=smem, size = 0x200, scoped, tag = 'prefetched SMEM operand 0']
  %s0 = inlined_call_operand.vmem [shape: f32[8], index: 0, kind: input, shape index: {}]
  %s1 = inlined_call_operand.hbm [shape: f32[8,256,128], index: 1, kind: input, shape index: {}]
  %s2 = inlined_call_operand.hbm [shape: f32[8,256,128], index: 2, kind: input, shape index: {}]
  %s3 = inlined_call_operand.hbm [shape: f32[8,256,128], index: 3, kind: input, shape index: {}]
  %s4 = inlined_call_operand.hbm [shape: f32[8,256,128], index: 4, kind: output, shape index: {}]
  %s5 = sld [smem:[#allocation0]]
  $region61: #{lightning_attention.1} parent=0
    _
  %s7 = ssub.s32 1, %s5
  %s8 = scalar_select 0, %s7, %s5
  %s10 = sshll.u32 %s0, 4
  %s11 = int_to_ptr.vmem [resolvable:$true] %s10
  %13 = dma.vmem_to_smem %s11, 16, [#allocation7], [#allocation6]
  %15 = dma.done [#allocation6], 16
  %16 = sfence
  $region1: #{lightning_attention.1} parent=0
    #allocation8 [shape = 'u8[131072]{0}', space=vmem, size = 0x20000, scoped, tag = 'input window, operand 1']
    #allocation9 [shape = 's32[2]{0}', space=sflag, size = 0x8, scoped, tag = 'scoped memory for lightning_attention.1']
    #allocation10 [shape = 's32[2]{0}', space=sflag, size = 0x8, scoped, tag = 'scoped memory for lightning_attention.1']
    #allocation11 [shape = 'u8[131072]{0}', space=vmem, size = 0x20000, scoped, tag = 'input window, operand 2']
    #allocation12 [shape = 's32[2]{0}', space=sflag, size = 0x8, scoped, tag = 'scoped memory for lightning_attention.1']
    #allocation13 [shape = 'u8[131072]{0}', space=vmem, size = 0x20000, scoped, tag = 'input window, operand 3']
    #allocation14 [shape = 'u8[131072]{0}', space=vmem, size = 0x20000, scoped, tag = 'output window, operand 0']
    %17 = vsyncpa [#allocation9], 0
    %s18 = scalar_lea.sflag [#allocation9], 1
    %19 = vsyncpa %s18, 0
    %20 = vsyncpa [#allocation12], 0
    %s21 = scalar_lea.sflag [#allocation12], 1
    %22 = vsyncpa %s21, 0
    %23 = vsyncpa [#allocation10], 0
    %s24 = scalar_lea.sflag [#allocation10], 1
    %25 = vsyncpa %s24, 0
    loop: start=0, step=1, limit=18
    $region2: #{lightning_attention.1} parent=1 // loop_pre_header
      _
    $region3: #{lightning_attention.1} parent=1 // loop_header
      %s27 = sphi 0, %s31
      %p28 = scmp.ge.s32.totalorder %s27, 18
      %s34 = sphi 0, %s46
      %s35 = sphi 0, %s42
      %s36 = sphi 0, %s34
      %s37 = sphi 0, %s35
      %s38 = sphi 0, %s36
      %s39 = sphi 0, %s37
      %s51 = sphi 0, %s53
      %s54 = sphi 0, %s51
      %s55 = sphi 0, %s54
      %s71 = sphi 0, %s55
      %s79 = sphi 0, %s81
      %s82 = sphi 0, %s79
      %s83 = sphi 0, %s82
      %s99 = sphi 0, %s83
      %s107 = sphi 0, %s109
      %s110 = sphi 0, %s107
      %s111 = sphi 0, %s110
      %s127 = sphi 0, %s111
      %s135 = sphi 0, %s137
      %s138 = sphi 0, %s135
      %s139 = sphi 0, %s138
      %s155 = sphi 0, %s139
    $region4: #{lightning_attention.1} parent=1 // loop_header_branch
      %30 = sbr.rel (%p28) target = $region8
    $region5: #{lightning_attention.1} parent=1 // loop_body
      %s32 = ssub.s32 %s27, 1
      %s33 = ssub.s32 %s27, 2
      %s40 = sadd.s32 1, %s35
      %p41 = scmp.ge.s32.totalorder %s40, 2
      %s42 = scalar_select %p41, 0, %s40
      %s43 = sadd.s32 1, %s34
      %s44 = scalar_select %p41, %s43, %s34
      %p45 = scmp.ge.s32.totalorder %s44, 8
      %s46 = scalar_select %p45, 0, %s44
      %s47 = ssub.s32 %s34, %s46
      %s48 = ssub.s32 %s35, %s42
      %s49 = sor.u32 %s47, %s48
      %p50 = scmp.eq.s32.totalorder %s49, 0
      %s52 = sadd.s32 %s51, 1
      %s53 = scalar_select %p50, %s51, %s52
      %p56 = pneg %p50
      %p57 = scmp.eq.s32.totalorder %s27, 15
      %p58 = por %p56, %p57
      %p59 = scmp.ne.s32.totalorder %s51, %s54
      %p60 = scmp.eq.s32.totalorder %s27, 0
      %p61 = por %p59, %p60
      %p62 = scmp.ne.s32.totalorder %s51, %s54
      %p63 = scmp.eq.s32.totalorder %s32, 15
      %p64 = por %p62, %p63
      %p65 = scmp.ne.s32.totalorder %s54, %s55
      %p66 = scmp.eq.s32.totalorder %s32, 0
      %p67 = por %p65, %p66
      %p68 = scmp.ne.s32.totalorder %s54, %s55
      %p69 = scmp.eq.s32.totalorder %s33, 15
      %p70 = por %p68, %p69
      %p72 = scmp.ne.s32.totalorder %s55, %s71
      %p73 = scmp.eq.s32.totalorder %s33, 0
      %p74 = por %p72, %p73
      %s75 = ssub.s32 %s34, %s46
      %s76 = ssub.s32 %s35, %s42
      %s77 = sor.u32 %s75, %s76
      %p78 = scmp.eq.s32.totalorder %s77, 0
      %s80 = sadd.s32 %s79, 1
      %s81 = scalar_select %p78, %s79, %s80
      %p84 = pneg %p78
      %p85 = scmp.eq.s32.totalorder %s27, 15
      %p86 = por %p84, %p85
      %p87 = scmp.ne.s32.totalorder %s79, %s82
      %p88 = scmp.eq.s32.totalorder %s27, 0
      %p89 = por %p87, %p88
      %p90 = scmp.ne.s32.totalorder %s79, %s82
      %p91 = scmp.eq.s32.totalorder %s32, 15
      %p92 = por %p90, %p91
      %p93 = scmp.ne.s32.totalorder %s82, %s83
      %p94 = scmp.eq.s32.totalorder %s32, 0
      %p95 = por %p93, %p94
      %p96 = scmp.ne.s32.totalorder %s82, %s83
      %p97 = scmp.eq.s32.totalorder %s33, 15
      %p98 = por %p96, %p97
      %p100 = scmp.ne.s32.totalorder %s83, %s99
      %p101 = scmp.eq.s32.totalorder %s33, 0
      %p102 = por %p100, %p101
      %s103 = ssub.s32 %s34, %s46
      %s104 = ssub.s32 %s35, %s42
      %s105 = sor.u32 %s103, %s104
      %p106 = scmp.eq.s32.totalorder %s105, 0
      %s108 = sadd.s32 %s107, 1
      %s109 = scalar_select %p106, %s107, %s108
      %p112 = pneg %p106
      %p113 = scmp.eq.s32.totalorder %s27, 15
      %p114 = por %p112, %p113
      %p115 = scmp.ne.s32.totalorder %s107, %s110
      %p116 = scmp.eq.s32.totalorder %s27, 0
      %p117 = por %p115, %p116
      %p118 = scmp.ne.s32.totalorder %s107, %s110
      %p119 = scmp.eq.s32.totalorder %s32, 15
      %p120 = por %p118, %p119
      %p121 = scmp.ne.s32.totalorder %s110, %s111
      %p122 = scmp.eq.s32.totalorder %s32, 0
      %p123 = por %p121, %p122
      %p124 = scmp.ne.s32.totalorder %s110, %s111
      %p125 = scmp.eq.s32.totalorder %s33, 15
      %p126 = por %p124, %p125
      %p128 = scmp.ne.s32.totalorder %s111, %s127
      %p129 = scmp.eq.s32.totalorder %s33, 0
      %p130 = por %p128, %p129
      %s131 = ssub.s32 %s34, %s46
      %s132 = ssub.s32 %s35, %s42
      %s133 = sor.u32 %s131, %s132
      %p134 = scmp.eq.s32.totalorder %s133, 0
      %s136 = sadd.s32 %s135, 1
      %s137 = scalar_select %p134, %s135, %s136
      %p140 = pneg %p134
      %p141 = scmp.eq.s32.totalorder %s27, 15
      %p142 = por %p140, %p141
      %p143 = scmp.ne.s32.totalorder %s135, %s138
      %p144 = scmp.eq.s32.totalorder %s27, 0
      %p145 = por %p143, %p144
      %p146 = scmp.ne.s32.totalorder %s135, %s138
      %p147 = scmp.eq.s32.totalorder %s32, 15
      %p148 = por %p146, %p147
      %p149 = scmp.ne.s32.totalorder %s138, %s139
      %p150 = scmp.eq.s32.totalorder %s32, 0
      %p151 = por %p149, %p150
      %p152 = scmp.ne.s32.totalorder %s138, %s139
      %p153 = scmp.eq.s32.totalorder %s33, 15
      %p154 = por %p152, %p153
      %p156 = scmp.ne.s32.totalorder %s139, %s155
      %p157 = scmp.eq.s32.totalorder %s33, 0
      %p158 = por %p156, %p157
      %p159 = scmp.le.s32.totalorder 1, %s27
      %p160 = scmp.lt.s32.totalorder %s27, 17
      %p161 = pnand %p159, %p160
      %p162 = pneg %p161
      // Predicated region
      $region9: #{lightning_attention.1} parent=5 // pred_check
        _
      $region10: #{lightning_attention.1} parent=5 // pred_check_branch
        %164 = sbr.rel (%p161) target = $region12
      $region11: #{lightning_attention.1} parent=5 // pred_region
        %s165 = ssub.s32 %s27, 1
      $region12: #{lightning_attention.1} parent=5 // pred_fallthru
        _
      %p166 = scmp.lt.s32.totalorder %s27, 16
      // Predicated region
      $region13: #{lightning_attention.1} parent=5 // pred_check
        %p167 = pneg %p166
      $region14: #{lightning_attention.1} parent=5 // pred_check_branch
        %169 = sbr.rel (%p167) target = $region16
      $region15: #{lightning_attention.1} parent=5 // pred_region
        // Predicated region
        $region17: #{lightning_attention.1} parent=15 // pred_check
          %p170 = pneg %p61
        $region18: #{lightning_attention.1} parent=15 // pred_check_branch
          %172 = sbr.rel (%p170) target = $region20
        $region19: #{lightning_attention.1} parent=15 // pred_region
          %s173 = sand.u32 %s51, 1
          %s174 = scalar_lea.sflag [#allocation9], %s173
          %s175 = sand.u32 %s51, 1
          %s176 = smul.addr %s175, 128
          %s177 = scalar_lea.vmem [#allocation8], %s176
          %s178 = smul.u32 16, %s35
          %180 = vsyncadd %s174, 0
          %s181 = smul.addr %s34, 32
          %s182 = sadd.s32 %s178, %s181
          %s183 = smul.addr %s182, 8
          %s184 = scalar_lea.hbm %s1, %s183
          %s185 = sshll.u32 %s184, 4
          %s186 = int_to_ptr.hbm [resolvable:$true] %s185
          %s187 = sshll.u32 %s177, 4
          %s188 = int_to_ptr.vmem [resolvable:$true] %s187
          %193 = dma.hbm_to_vmem [thread:$0]  %s186, 2048, %s188, %s174, 128, 128, 8
        $region20: #{lightning_attention.1} parent=15 // pred_fallthru
          _
        // Predicated region
        $region21: #{lightning_attention.1} parent=15 // pred_check
          %p194 = pneg %p89
        $region22: #{lightning_attention.1} parent=15 // pred_check_branch
          %196 = sbr.rel (%p194) target = $region24
        $region23: #{lightning_attention.1} parent=15 // pred_region
          %s197 = sand.u32 %s27, 1
          %s198 = scalar_lea.sflag [#allocation12], %s197
          %s199 = sand.u32 %s79, 1
          %s200 = smul.addr %s199, 128
          %s201 = scalar_lea.vmem [#allocation11], %s200
          %s202 = smul.u32 16, %s35
          %204 = vsyncadd %s198, 0
          %s205 = smul.addr %s34, 32
          %s206 = sadd.s32 %s202, %s205
          %s207 = smul.addr %s206, 8
          %s208 = scalar_lea.hbm %s2, %s207
          %s209 = sshll.u32 %s208, 4
          %s210 = int_to_ptr.hbm [resolvable:$true] %s209
          %s211 = sshll.u32 %s201, 4
          %s212 = int_to_ptr.vmem [resolvable:$true] %s211
          %217 = dma.hbm_to_vmem [thread:$0]  %s210, 2048, %s212, %s198, 128, 128, 8
        $region24: #{lightning_attention.1} parent=15 // pred_fallthru
          _
        // Predicated region
        $region25: #{lightning_attention.1} parent=15 // pred_check
          %p218 = pneg %p117
        $region26: #{lightning_attention.1} parent=15 // pred_check_branch
          %220 = sbr.rel (%p218) target = $region28
        $region27: #{lightning_attention.1} parent=15 // pred_region
          %s221 = sand.u32 %s27, 1
          %s222 = scalar_lea.sflag [#allocation12], %s221
          %s223 = sand.u32 %s107, 1
          %s224 = smul.addr %s223, 128
          %s225 = scalar_lea.vmem [#allocation13], %s224
          %s226 = smul.u32 16, %s35
          %228 = vsyncadd %s222, 0
          %s229 = smul.addr %s34, 32
          %s230 = sadd.s32 %s226, %s229
          %s231 = smul.addr %s230, 8
          %s232 = scalar_lea.hbm %s3, %s231
          %s233 = sshll.u32 %s232, 4
          %s234 = int_to_ptr.hbm [resolvable:$true] %s233
          %s235 = sshll.u32 %s225, 4
          %s236 = int_to_ptr.vmem [resolvable:$true] %s235
          %241 = dma.hbm_to_vmem [thread:$0]  %s234, 2048, %s236, %s222, 128, 128, 8
        $region28: #{lightning_attention.1} parent=15 // pred_fallthru
          _
      $region16: #{lightning_attention.1} parent=5 // pred_fallthru
        _
      %p242 = scmp.le.s32.totalorder 1, %s27
      %p243 = scmp.lt.s32.totalorder %s27, 17
      %p244 = pnand %p242, %p243
      %p245 = pneg %p244
      // Predicated region
      $region29: #{lightning_attention.1} parent=5 // pred_check
        _
      $region30: #{lightning_attention.1} parent=5 // pred_check_branch
        %247 = sbr.rel (%p244) target = $region32
      $region31: #{lightning_attention.1} parent=5 // pred_region
        %s248 = ssub.s32 %s27, 1
        %s249 = sand.u32 %s54, 1
        %s250 = scalar_lea.sflag [#allocation9], %s249
        %s251 = sand.u32 %s54, 1
        %s252 = smul.addr %s251, 128
        %s253 = scalar_lea.vmem [#allocation8], %s252
        // Predicated region
        $region33: #{lightning_attention.1} parent=31 // pred_check
          %p254 = pneg %p67
        $region34: #{lightning_attention.1} parent=31 // pred_check_branch
          %256 = sbr.rel (%p254) target = $region36
        $region35: #{lightning_attention.1} parent=31 // pred_region
          %258 = dma.done %s250, 2048
        $region36: #{lightning_attention.1} parent=31 // pred_fallthru
          _
        %s259 = sand.u32 %s32, 1
        %s260 = scalar_lea.sflag [#allocation12], %s259
        %s261 = sand.u32 %s82, 1
        %s262 = smul.addr %s261, 128
        %s263 = scalar_lea.vmem [#allocation11], %s262
        // Predicated region
        $region37: #{lightning_attention.1} parent=31 // pred_check
          %p264 = pneg %p95
        $region38: #{lightning_attention.1} parent=31 // pred_check_branch
          %266 = sbr.rel (%p264) target = $region40
        $region39: #{lightning_attention.1} parent=31 // pred_region
          %268 = dma.done %s260, 2048
        $region40: #{lightning_attention.1} parent=31 // pred_fallthru
          _
        %s269 = sand.u32 %s32, 1
        %s270 = scalar_lea.sflag [#allocation12], %s269
        %s271 = sand.u32 %s110, 1
        %s272 = smul.addr %s271, 128
        %s273 = scalar_lea.vmem [#allocation13], %s272
        // Predicated region
        $region41: #{lightning_attention.1} parent=31 // pred_check
          %p274 = pneg %p123
        $region42: #{lightning_attention.1} parent=31 // pred_check_branch
          %276 = sbr.rel (%p274) target = $region44
        $region43: #{lightning_attention.1} parent=31 // pred_region
          %278 = dma.done %s270, 2048
        $region44: #{lightning_attention.1} parent=31 // pred_fallthru
          _
        %s279 = sand.u32 %s54, 1
        %s280 = scalar_lea.sflag [#allocation9], %s279
        %s281 = sand.u32 %s54, 1
        %s282 = smul.addr %s281, 128
        %s283 = scalar_lea.vmem [#allocation8], %s282
        %p284 = pneg %p67
        %p285 = pneg %p64
        %s286 = sand.u32 %s32, 1
        %s287 = scalar_lea.sflag [#allocation12], %s286
        %s288 = sand.u32 %s82, 1
        %s289 = smul.addr %s288, 128
        %s290 = scalar_lea.vmem [#allocation11], %s289
        %p291 = pneg %p95
        %p292 = pneg %p92
        %s293 = sand.u32 %s32, 1
        %s294 = scalar_lea.sflag [#allocation12], %s293
        %s295 = sand.u32 %s110, 1
        %s296 = smul.addr %s295, 128
        %s297 = scalar_lea.vmem [#allocation13], %s296
        %p298 = pneg %p123
        %p299 = pneg %p120
        %p300 = pneg %p151
        %p301 = pneg %p148
        %s302 = sand.u32 %s138, 1
        %s303 = scalar_lea.sflag [#allocation10], %s302
        %s304 = sand.u32 %s138, 1
        %s305 = smul.addr %s304, 128
        %s306 = scalar_lea.vmem [#allocation14], %s305
        %s307 = smul.u32 16, %s37
        %s308 = smul.u32 16, %s37
        %s309 = smul.u32 16, %s37
        %s310 = smul.u32 16, %s37
        %s311 = sld [smem:[#allocation7 + %s36]]
        %p312 = scmp.eq.s32.totalorder %s37, 0
        // Predicated region
        $region45: #{lightning_attention.1} parent=31 // pred_check
          %p313 = pneg %p312
        $region46: #{lightning_attention.1} parent=31 // pred_check_branch
          %315 = sbr.rel (%p313) target = $region48
        $region47: #{lightning_attention.1} parent=31 // pred_region
          %316 = vst [vmem:[#allocation2] sm:$0xff] 0.0
          %317 = vst [vmem:[#allocation2 + $0x8] sm:$0xff] 0.0
          %318 = vst [vmem:[#allocation2 + $0x10] sm:$0xff] 0.0
          %319 = vst [vmem:[#allocation2 + $0x18] sm:$0xff] 0.0
          %320 = vst [vmem:[#allocation2 + $0x20] sm:$0xff] 0.0
          %321 = vst [vmem:[#allocation2 + $0x28] sm:$0xff] 0.0
          %322 = vst [vmem:[#allocation2 + $0x30] sm:$0xff] 0.0
          %323 = vst [vmem:[#allocation2 + $0x38] sm:$0xff] 0.0
          %324 = vst [vmem:[#allocation2 + $0x40] sm:$0xff] 0.0
          %325 = vst [vmem:[#allocation2 + $0x48] sm:$0xff] 0.0
          %326 = vst [vmem:[#allocation2 + $0x50] sm:$0xff] 0.0
          %327 = vst [vmem:[#allocation2 + $0x58] sm:$0xff] 0.0
          %328 = vst [vmem:[#allocation2 + $0x60] sm:$0xff] 0.0
          %329 = vst [vmem:[#allocation2 + $0x68] sm:$0xff] 0.0
          %330 = vst [vmem:[#allocation2 + $0x70] sm:$0xff] 0.0
          %331 = vst [vmem:[#allocation2 + $0x78] sm:$0xff] 0.0
          %v332 = vlaneseq
          %v333 = vshrl.u32 %v332, 7
          %v334 = vadd.s32 %v333, 8
          %v335 = vadd.s32 %v333, 16
          %v336 = vadd.s32 %v333, 24
          %v337 = vadd.s32 %v333, 32
          %v338 = vadd.s32 %v333, 40
          %v339 = vadd.s32 %v333, 48
          %v340 = vadd.s32 %v333, 56
          %v341 = vadd.s32 %v333, 64
          %v342 = vadd.s32 %v333, 72
          %v343 = vadd.s32 %v333, 80
          %v344 = vadd.s32 %v333, 88
          %v345 = vadd.s32 %v333, 96
          %v346 = vadd.s32 %v333, 104
          %v347 = vadd.s32 %v333, 112
          %v348 = vadd.s32 %v333, 120
          %v349 = vlaneseq
          %v350 = vand.u32 %v349, 127
          %v351 = vsub.s32 %v333, %v350
          %v352 = vsub.s32 %v334, %v350
          %v353 = vsub.s32 %v335, %v350
          %v354 = vsub.s32 %v336, %v350
          %v355 = vsub.s32 %v337, %v350
          %v356 = vsub.s32 %v338, %v350
          %v357 = vsub.s32 %v339, %v350
          %v358 = vsub.s32 %v340, %v350
          %v359 = vsub.s32 %v341, %v350
          %v360 = vsub.s32 %v342, %v350
          %v361 = vsub.s32 %v343, %v350
          %v362 = vsub.s32 %v344, %v350
          %v363 = vsub.s32 %v345, %v350
          %v364 = vsub.s32 %v346, %v350
          %v365 = vsub.s32 %v347, %v350
          %v366 = vsub.s32 %v348, %v350
          %v367 = vcvt.s32.f32 %v351
          %v368 = vcvt.s32.f32 %v352
          %v369 = vcvt.s32.f32 %v353
          %v370 = vcvt.s32.f32 %v354
          %v371 = vcvt.s32.f32 %v355
          %v372 = vcvt.s32.f32 %v356
          %v373 = vcvt.s32.f32 %v357
          %v374 = vcvt.s32.f32 %v358
          %v375 = vcvt.s32.f32 %v359
          %v376 = vcvt.s32.f32 %v360
          %v377 = vcvt.s32.f32 %v361
          %v378 = vcvt.s32.f32 %v362
          %v379 = vcvt.s32.f32 %v363
          %v380 = vcvt.s32.f32 %v364
          %v381 = vcvt.s32.f32 %v365
          %v382 = vcvt.s32.f32 %v366
          %s383 = ssub.f32 0.0, %s311
          %v384 = vmax.f32 %v367, 0.0
          %v385 = vmax.f32 %v368, 0.0
          %v386 = vmax.f32 %v369, 0.0
          %v387 = vmax.f32 %v370, 0.0
          %v388 = vmax.f32 %v371, 0.0
          %v389 = vmax.f32 %v372, 0.0
          %v390 = vmax.f32 %v373, 0.0
          %v391 = vmax.f32 %v374, 0.0
          %v392 = vmax.f32 %v375, 0.0
          %v393 = vmax.f32 %v376, 0.0
          %v394 = vmax.f32 %v377, 0.0
          %v395 = vmax.f32 %v378, 0.0
          %v396 = vmax.f32 %v379, 0.0
          %v397 = vmax.f32 %v380, 0.0
          %v398 = vmax.f32 %v381, 0.0
          %v399 = vmax.f32 %v382, 0.0
          %v400 = vstv %s383
          %v401 = vmul.f32 %v400, %v384
          %v402 = vmul.f32 %v400, %v385
          %v403 = vmul.f32 %v400, %v386
          %v404 = vmul.f32 %v400, %v387
          %v405 = vmul.f32 %v400, %v388
          %v406 = vmul.f32 %v400, %v389
          %v407 = vmul.f32 %v400, %v390
          %v408 = vmul.f32 %v400, %v391
          %v409 = vmul.f32 %v400, %v392
          %v410 = vmul.f32 %v400, %v393
          %v411 = vmul.f32 %v400, %v394
          %v412 = vmul.f32 %v400, %v395
          %v413 = vmul.f32 %v400, %v396
          %v414 = vmul.f32 %v400, %v397
          %v415 = vmul.f32 %v400, %v398
          %v416 = vmul.f32 %v400, %v399
          %v417 = vmul.f32 %v401, 1.442695
          %v418 = vpow.pop %v417
          %v419 = vmul.f32 %v402, 1.442695
          %v420 = vpow.pop %v419
          %v421 = vmul.f32 %v403, 1.442695
          %v422 = vpow.pop %v421
          %v423 = vmul.f32 %v404, 1.442695
          %v424 = vpow.pop %v423
          %v425 = vmul.f32 %v405, 1.442695
          %v426 = vpow.pop %v425
          %v427 = vmul.f32 %v406, 1.442695
          %v428 = vpow.pop %v427
          %v429 = vmul.f32 %v407, 1.442695
          %v430 = vpow.pop %v429
          %v431 = vmul.f32 %v408, 1.442695
          %v432 = vpow.pop %v431
          %v433 = vmul.f32 %v409, 1.442695
          %v434 = vpow.pop %v433
          %v435 = vmul.f32 %v410, 1.442695
          %v436 = vpow.pop %v435
          %v437 = vmul.f32 %v411, 1.442695
          %v438 = vpow.pop %v437
          %v439 = vmul.f32 %v412, 1.442695
          %v440 = vpow.pop %v439
          %v441 = vmul.f32 %v413, 1.442695
          %v442 = vpow.pop %v441
          %v443 = vmul.f32 %v414, 1.442695
          %v444 = vpow.pop %v443
          %v445 = vmul.f32 %v415, 1.442695
          %v446 = vpow.pop %v445
          %v447 = vmul.f32 %v416, 1.442695
          %v448 = vpow.pop %v447
          %vm449 = vcmp.ge.s32.totalorder %v333, %v350
          %vm450 = vcmp.ge.s32.totalorder %v334, %v350
          %vm451 = vcmp.ge.s32.totalorder %v335, %v350
          %vm452 = vcmp.ge.s32.totalorder %v336, %v350
          %vm453 = vcmp.ge.s32.totalorder %v337, %v350
          %vm454 = vcmp.ge.s32.totalorder %v338, %v350
          %vm455 = vcmp.ge.s32.totalorder %v339, %v350
          %vm456 = vcmp.ge.s32.totalorder %v340, %v350
          %vm457 = vcmp.ge.s32.totalorder %v341, %v350
          %vm458 = vcmp.ge.s32.totalorder %v342, %v350
          %vm459 = vcmp.ge.s32.totalorder %v343, %v350
          %vm460 = vcmp.ge.s32.totalorder %v344, %v350
          %vm461 = vcmp.ge.s32.totalorder %v345, %v350
          %vm462 = vcmp.ge.s32.totalorder %v346, %v350
          %vm463 = vcmp.ge.s32.totalorder %v347, %v350
          %vm464 = vcmp.ge.s32.totalorder %v348, %v350
          %v465 = vsel %vm449, %v418, 0.0
          %v466 = vsel %vm450, %v420, 0.0
          %v467 = vsel %vm451, %v422, 0.0
          %v468 = vsel %vm452, %v424, 0.0
          %v469 = vsel %vm453, %v426, 0.0
          %v470 = vsel %vm454, %v428, 0.0
          %v471 = vsel %vm455, %v430, 0.0
          %v472 = vsel %vm456, %v432, 0.0
          %v473 = vsel %vm457, %v434, 0.0
          %v474 = vsel %vm458, %v436, 0.0
          %v475 = vsel %vm459, %v438, 0.0
          %v476 = vsel %vm460, %v440, 0.0
          %v477 = vsel %vm461, %v442, 0.0
          %v478 = vsel %vm462, %v444, 0.0
          %v479 = vsel %vm463, %v446, 0.0
          %v480 = vsel %vm464, %v448, 0.0
          %481 = vst [vmem:[#allocation3] sm:$0xff] %v465
          %482 = vst [vmem:[#allocation3 + $0x8] sm:$0xff] %v466
          %483 = vst [vmem:[#allocation3 + $0x10] sm:$0xff] %v467
          %484 = vst [vmem:[#allocation3 + $0x18] sm:$0xff] %v468
          %485 = vst [vmem:[#allocation3 + $0x20] sm:$0xff] %v469
          %486 = vst [vmem:[#allocation3 + $0x28] sm:$0xff] %v470
          %487 = vst [vmem:[#allocation3 + $0x30] sm:$0xff] %v471
          %488 = vst [vmem:[#allocation3 + $0x38] sm:$0xff] %v472
          %489 = vst [vmem:[#allocation3 + $0x40] sm:$0xff] %v473
          %490 = vst [vmem:[#allocation3 + $0x48] sm:$0xff] %v474
          %491 = vst [vmem:[#allocation3 + $0x50] sm:$0xff] %v475
          %492 = vst [vmem:[#allocation3 + $0x58] sm:$0xff] %v476
          %493 = vst [vmem:[#allocation3 + $0x60] sm:$0xff] %v477
          %494 = vst [vmem:[#allocation3 + $0x68] sm:$0xff] %v478
          %495 = vst [vmem:[#allocation3 + $0x70] sm:$0xff] %v479
          %496 = vst [vmem:[#allocation3 + $0x78] sm:$0xff] %v480
          %v497 = vcvt.s32.f32 %v333
          %v498 = vcvt.s32.f32 %v334
          %v499 = vcvt.s32.f32 %v335
          %v500 = vcvt.s32.f32 %v336
          %v501 = vcvt.s32.f32 %v337
          %v502 = vcvt.s32.f32 %v338
          %v503 = vcvt.s32.f32 %v339
          %v504 = vcvt.s32.f32 %v340
          %v505 = vcvt.s32.f32 %v341
          %v506 = vcvt.s32.f32 %v342
          %v507 = vcvt.s32.f32 %v343
          %v508 = vcvt.s32.f32 %v344
          %v509 = vcvt.s32.f32 %v345
          %v510 = vcvt.s32.f32 %v346
          %v511 = vcvt.s32.f32 %v347
          %v512 = vcvt.s32.f32 %v348
          %v513 = vmul.f32 %v400, %v497
          %v514 = vmul.f32 %v400, %v498
          %v515 = vmul.f32 %v400, %v499
          %v516 = vmul.f32 %v400, %v500
          %v517 = vmul.f32 %v400, %v501
          %v518 = vmul.f32 %v400, %v502
          %v519 = vmul.f32 %v400, %v503
          %v520 = vmul.f32 %v400, %v504
          %v521 = vmul.f32 %v400, %v505
          %v522 = vmul.f32 %v400, %v506
          %v523 = vmul.f32 %v400, %v507
          %v524 = vmul.f32 %v400, %v508
          %v525 = vmul.f32 %v400, %v509
          %v526 = vmul.f32 %v400, %v510
          %v527 = vmul.f32 %v400, %v511
          %v528 = vmul.f32 %v400, %v512
          %v529 = vmul.f32 %v513, 1.442695
          %v530 = vpow.pop %v529
          %v531 = vmul.f32 %v514, 1.442695
          %v532 = vpow.pop %v531
          %v533 = vmul.f32 %v515, 1.442695
          %v534 = vpow.pop %v533
          %v535 = vmul.f32 %v516, 1.442695
          %v536 = vpow.pop %v535
          %v537 = vmul.f32 %v517, 1.442695
          %v538 = vpow.pop %v537
          %v539 = vmul.f32 %v518, 1.442695
          %v540 = vpow.pop %v539
          %v541 = vmul.f32 %v519, 1.442695
          %v542 = vpow.pop %v541
          %v543 = vmul.f32 %v520, 1.442695
          %v544 = vpow.pop %v543
          %v545 = vmul.f32 %v521, 1.442695
          %v546 = vpow.pop %v545
          %v547 = vmul.f32 %v522, 1.442695
          %v548 = vpow.pop %v547
          %v549 = vmul.f32 %v523, 1.442695
          %v550 = vpow.pop %v549
          %v551 = vmul.f32 %v524, 1.442695
          %v552 = vpow.pop %v551
          %v553 = vmul.f32 %v525, 1.442695
          %v554 = vpow.pop %v553
          %v555 = vmul.f32 %v526, 1.442695
          %v556 = vpow.pop %v555
          %v557 = vmul.f32 %v527, 1.442695
          %v558 = vpow.pop %v557
          %v559 = vmul.f32 %v528, 1.442695
          %v560 = vpow.pop %v559
          %vm561 = vcmask 7168
          %562 = vst.msk [vmem:[#allocation4] sm:$0xff] %vm561, %v530
          %563 = vst.msk [vmem:[#allocation4 + $0x8] sm:$0xff] %vm561, %v532
          %564 = vst.msk [vmem:[#allocation4 + $0x10] sm:$0xff] %vm561, %v534
          %565 = vst.msk [vmem:[#allocation4 + $0x18] sm:$0xff] %vm561, %v536
          %566 = vst.msk [vmem:[#allocation4 + $0x20] sm:$0xff] %vm561, %v538
          %567 = vst.msk [vmem:[#allocation4 + $0x28] sm:$0xff] %vm561, %v540
          %568 = vst.msk [vmem:[#allocation4 + $0x30] sm:$0xff] %vm561, %v542
          %569 = vst.msk [vmem:[#allocation4 + $0x38] sm:$0xff] %vm561, %v544
          %570 = vst.msk [vmem:[#allocation4 + $0x40] sm:$0xff] %vm561, %v546
          %571 = vst.msk [vmem:[#allocation4 + $0x48] sm:$0xff] %vm561, %v548
          %572 = vst.msk [vmem:[#allocation4 + $0x50] sm:$0xff] %vm561, %v550
          %573 = vst.msk [vmem:[#allocation4 + $0x58] sm:$0xff] %vm561, %v552
          %574 = vst.msk [vmem:[#allocation4 + $0x60] sm:$0xff] %vm561, %v554
          %575 = vst.msk [vmem:[#allocation4 + $0x68] sm:$0xff] %vm561, %v556
          %576 = vst.msk [vmem:[#allocation4 + $0x70] sm:$0xff] %vm561, %v558
          %577 = vst.msk [vmem:[#allocation4 + $0x78] sm:$0xff] %vm561, %v560
          %v578 = vsub.f32 128.0, %v497
          %v579 = vsub.f32 128.0, %v498
          %v580 = vsub.f32 128.0, %v499
          %v581 = vsub.f32 128.0, %v500
          %v582 = vsub.f32 128.0, %v501
          %v583 = vsub.f32 128.0, %v502
          %v584 = vsub.f32 128.0, %v503
          %v585 = vsub.f32 128.0, %v504
          %v586 = vsub.f32 128.0, %v505
          %v587 = vsub.f32 128.0, %v506
          %v588 = vsub.f32 128.0, %v507
          %v589 = vsub.f32 128.0, %v508
          %v590 = vsub.f32 128.0, %v509
          %v591 = vsub.f32 128.0, %v510
          %v592 = vsub.f32 128.0, %v511
          %v593 = vsub.f32 128.0, %v512
          %v594 = vmul.f32 %v400, %v578
          %v595 = vmul.f32 %v400, %v579
          %v596 = vmul.f32 %v400, %v580
          %v597 = vmul.f32 %v400, %v581
          %v598 = vmul.f32 %v400, %v582
          %v599 = vmul.f32 %v400, %v583
          %v600 = vmul.f32 %v400, %v584
          %v601 = vmul.f32 %v400, %v585
          %v602 = vmul.f32 %v400, %v586
          %v603 = vmul.f32 %v400, %v587
          %v604 = vmul.f32 %v400, %v588
          %v605 = vmul.f32 %v400, %v589
          %v606 = vmul.f32 %v400, %v590
          %v607 = vmul.f32 %v400, %v591
          %v608 = vmul.f32 %v400, %v592
          %v609 = vmul.f32 %v400, %v593
          %v610 = vmul.f32 %v594, 1.442695
          %v611 = vpow.pop %v610
          %v612 = vmul.f32 %v595, 1.442695
          %v613 = vpow.pop %v612
          %v614 = vmul.f32 %v596, 1.442695
          %v615 = vpow.pop %v614
          %v616 = vmul.f32 %v597, 1.442695
          %v617 = vpow.pop %v616
          %v618 = vmul.f32 %v598, 1.442695
          %v619 = vpow.pop %v618
          %v620 = vmul.f32 %v599, 1.442695
          %v621 = vpow.pop %v620
          %v622 = vmul.f32 %v600, 1.442695
          %v623 = vpow.pop %v622
          %v624 = vmul.f32 %v601, 1.442695
          %v625 = vpow.pop %v624
          %v626 = vmul.f32 %v602, 1.442695
          %v627 = vpow.pop %v626
          %v628 = vmul.f32 %v603, 1.442695
          %v629 = vpow.pop %v628
          %v630 = vmul.f32 %v604, 1.442695
          %v631 = vpow.pop %v630
          %v632 = vmul.f32 %v605, 1.442695
          %v633 = vpow.pop %v632
          %v634 = vmul.f32 %v606, 1.442695
          %v635 = vpow.pop %v634
          %v636 = vmul.f32 %v607, 1.442695
          %v637 = vpow.pop %v636
          %v638 = vmul.f32 %v608, 1.442695
          %v639 = vpow.pop %v638
          %v640 = vmul.f32 %v609, 1.442695
          %v641 = vpow.pop %v640
          %642 = vst.msk [vmem:[#allocation5] sm:$0xff] %vm561, %v611
          %643 = vst.msk [vmem:[#allocation5 + $0x8] sm:$0xff] %vm561, %v613
          %644 = vst.msk [vmem:[#allocation5 + $0x10] sm:$0xff] %vm561, %v615
          %645 = vst.msk [vmem:[#allocation5 + $0x18] sm:$0xff] %vm561, %v617
          %646 = vst.msk [vmem:[#allocation5 + $0x20] sm:$0xff] %vm561, %v619
          %647 = vst.msk [vmem:[#allocation5 + $0x28] sm:$0xff] %vm561, %v621
          %648 = vst.msk [vmem:[#allocation5 + $0x30] sm:$0xff] %vm561, %v623
          %649 = vst.msk [vmem:[#allocation5 + $0x38] sm:$0xff] %vm561, %v625
          %650 = vst.msk [vmem:[#allocation5 + $0x40] sm:$0xff] %vm561, %v627
          %651 = vst.msk [vmem:[#allocation5 + $0x48] sm:$0xff] %vm561, %v629
          %652 = vst.msk [vmem:[#allocation5 + $0x50] sm:$0xff] %vm561, %v631
          %653 = vst.msk [vmem:[#allocation5 + $0x58] sm:$0xff] %vm561, %v633
          %654 = vst.msk [vmem:[#allocation5 + $0x60] sm:$0xff] %vm561, %v635
          %655 = vst.msk [vmem:[#allocation5 + $0x68] sm:$0xff] %vm561, %v637
          %656 = vst.msk [vmem:[#allocation5 + $0x70] sm:$0xff] %vm561, %v639
          %657 = vst.msk [vmem:[#allocation5 + $0x78] sm:$0xff] %vm561, %v641
        $region48: #{lightning_attention.1} parent=31 // pred_fallthru
          _
        %v658 = vld [vmem:[%s253] sm:$0xff]
        %v659 = vld [vmem:[%s253 + $0x8] sm:$0xff]
        %v660 = vld [vmem:[%s253 + $0x10] sm:$0xff]
        %v661 = vld [vmem:[%s253 + $0x18] sm:$0xff]
        %v662 = vld [vmem:[%s253 + $0x20] sm:$0xff]
        %v663 = vld [vmem:[%s253 + $0x28] sm:$0xff]
        %v664 = vld [vmem:[%s253 + $0x30] sm:$0xff]
        %v665 = vld [vmem:[%s253 + $0x38] sm:$0xff]
        %v666 = vld [vmem:[%s253 + $0x40] sm:$0xff]
        %v667 = vld [vmem:[%s253 + $0x48] sm:$0xff]
        %v668 = vld [vmem:[%s253 + $0x50] sm:$0xff]
        %v669 = vld [vmem:[%s253 + $0x58] sm:$0xff]
        %v670 = vld [vmem:[%s253 + $0x60] sm:$0xff]
        %v671 = vld [vmem:[%s253 + $0x68] sm:$0xff]
        %v672 = vld [vmem:[%s253 + $0x70] sm:$0xff]
        %v673 = vld [vmem:[%s253 + $0x78] sm:$0xff]
        %v674 = vld [vmem:[%s263] sm:$0xff]
        %v675 = vld [vmem:[%s263 + $0x8] sm:$0xff]
        %v676 = vld [vmem:[%s263 + $0x10] sm:$0xff]
        %v677 = vld [vmem:[%s263 + $0x18] sm:$0xff]
        %v678 = vld [vmem:[%s263 + $0x20] sm:$0xff]
        %v679 = vld [vmem:[%s263 + $0x28] sm:$0xff]
        %v680 = vld [vmem:[%s263 + $0x30] sm:$0xff]
        %v681 = vld [vmem:[%s263 + $0x38] sm:$0xff]
        %v682 = vld [vmem:[%s263 + $0x40] sm:$0xff]
        %v683 = vld [vmem:[%s263 + $0x48] sm:$0xff]
        %v684 = vld [vmem:[%s263 + $0x50] sm:$0xff]
        %v685 = vld [vmem:[%s263 + $0x58] sm:$0xff]
        %v686 = vld [vmem:[%s263 + $0x60] sm:$0xff]
        %v687 = vld [vmem:[%s263 + $0x68] sm:$0xff]
        %v688 = vld [vmem:[%s263 + $0x70] sm:$0xff]
        %v689 = vld [vmem:[%s263 + $0x78] sm:$0xff]
        %v690 = vld [vmem:[%s273] sm:$0xff]
        %v691 = vld [vmem:[%s273 + $0x8] sm:$0xff]
        %v692 = vld [vmem:[%s273 + $0x10] sm:$0xff]
        %v693 = vld [vmem:[%s273 + $0x18] sm:$0xff]
        %v694 = vld [vmem:[%s273 + $0x20] sm:$0xff]
        %v695 = vld [vmem:[%s273 + $0x28] sm:$0xff]
        %v696 = vld [vmem:[%s273 + $0x30] sm:$0xff]
        %v697 = vld [vmem:[%s273 + $0x38] sm:$0xff]
        %v698 = vld [vmem:[%s273 + $0x40] sm:$0xff]
        %v699 = vld [vmem:[%s273 + $0x48] sm:$0xff]
        %v700 = vld [vmem:[%s273 + $0x50] sm:$0xff]
        %v701 = vld [vmem:[%s273 + $0x58] sm:$0xff]
        %v702 = vld [vmem:[%s273 + $0x60] sm:$0xff]
        %v703 = vld [vmem:[%s273 + $0x68] sm:$0xff]
        %v704 = vld [vmem:[%s273 + $0x70] sm:$0xff]
        %v705 = vld [vmem:[%s273 + $0x78] sm:$0xff]
        %v706 = vld [vmem:[#allocation2] sm:$0xff]
        %v707 = vld [vmem:[#allocation2 + $0x8] sm:$0xff]
        %v708 = vld [vmem:[#allocation2 + $0x10] sm:$0xff]
        %v709 = vld [vmem:[#allocation2 + $0x18] sm:$0xff]
        %v710 = vld [vmem:[#allocation2 + $0x20] sm:$0xff]
        %v711 = vld [vmem:[#allocation2 + $0x28] sm:$0xff]
        %v712 = vld [vmem:[#allocation2 + $0x30] sm:$0xff]
        %v713 = vld [vmem:[#allocation2 + $0x38] sm:$0xff]
        %v714 = vld [vmem:[#allocation2 + $0x40] sm:$0xff]
        %v715 = vld [vmem:[#allocation2 + $0x48] sm:$0xff]
        %v716 = vld [vmem:[#allocation2 + $0x50] sm:$0xff]
        %v717 = vld [vmem:[#allocation2 + $0x58] sm:$0xff]
        %v718 = vld [vmem:[#allocation2 + $0x60] sm:$0xff]
        %v719 = vld [vmem:[#allocation2 + $0x68] sm:$0xff]
        %v720 = vld [vmem:[#allocation2 + $0x70] sm:$0xff]
        %v721 = vld [vmem:[#allocation2 + $0x78] sm:$0xff]
        %v722 = vld [vmem:[#allocation4] sm:$0xff]
        %v723 = vld [vmem:[#allocation4 + $0x8] sm:$0xff]
        %v724 = vld [vmem:[#allocation4 + $0x10] sm:$0xff]
        %v725 = vld [vmem:[#allocation4 + $0x18] sm:$0xff]
        %v726 = vld [vmem:[#allocation4 + $0x20] sm:$0xff]
        %v727 = vld [vmem:[#allocation4 + $0x28] sm:$0xff]
        %v728 = vld [vmem:[#allocation4 + $0x30] sm:$0xff]
        %v729 = vld [vmem:[#allocation4 + $0x38] sm:$0xff]
        %v730 = vld [vmem:[#allocation4 + $0x40] sm:$0xff]
        %v731 = vld [vmem:[#allocation4 + $0x48] sm:$0xff]
        %v732 = vld [vmem:[#allocation4 + $0x50] sm:$0xff]
        %v733 = vld [vmem:[#allocation4 + $0x58] sm:$0xff]
        %v734 = vld [vmem:[#allocation4 + $0x60] sm:$0xff]
        %v735 = vld [vmem:[#allocation4 + $0x68] sm:$0xff]
        %v736 = vld [vmem:[#allocation4 + $0x70] sm:$0xff]
        %v737 = vld [vmem:[#allocation4 + $0x78] sm:$0xff]
        %v738 = vld [vmem:[#allocation5] sm:$0xff]
        %v739 = vld [vmem:[#allocation5 + $0x8] sm:$0xff]
        %v740 = vld [vmem:[#allocation5 + $0x10] sm:$0xff]
        %v741 = vld [vmem:[#allocation5 + $0x18] sm:$0xff]
        %v742 = vld [vmem:[#allocation5 + $0x20] sm:$0xff]
        %v743 = vld [vmem:[#allocation5 + $0x28] sm:$0xff]
        %v744 = vld [vmem:[#allocation5 + $0x30] sm:$0xff]
        %v745 = vld [vmem:[#allocation5 + $0x38] sm:$0xff]
        %v746 = vld [vmem:[#allocation5 + $0x40] sm:$0xff]
        %v747 = vld [vmem:[#allocation5 + $0x48] sm:$0xff]
        %v748 = vld [vmem:[#allocation5 + $0x50] sm:$0xff]
        %v749 = vld [vmem:[#allocation5 + $0x58] sm:$0xff]
        %v750 = vld [vmem:[#allocation5 + $0x60] sm:$0xff]
        %v751 = vld [vmem:[#allocation5 + $0x68] sm:$0xff]
        %v752 = vld [vmem:[#allocation5 + $0x70] sm:$0xff]
        %v753 = vld [vmem:[#allocation5 + $0x78] sm:$0xff]
        %v754 = vpack.c.bf16 %v659, %v658
        %v755 = vpack.c.bf16 %v661, %v660
        %v756 = vpack.c.bf16 %v663, %v662
        %v757 = vpack.c.bf16 %v665, %v664
        %v758 = vpack.c.bf16 %v667, %v666
        %v759 = vpack.c.bf16 %v669, %v668
        %v760 = vpack.c.bf16 %v671, %v670
        %v761 = vpack.c.bf16 %v673, %v672
        %v762 = vpack.c.bf16 %v675, %v674
        %v763 = vpack.c.bf16 %v677, %v676
        %v764 = vpack.c.bf16 %v679, %v678
        %v765 = vpack.c.bf16 %v681, %v680
        %v766 = vpack.c.bf16 %v683, %v682
        %v767 = vpack.c.bf16 %v685, %v684
        %v768 = vpack.c.bf16 %v687, %v686
        %v769 = vpack.c.bf16 %v689, %v688
        %v770 = vpack.c.bf16 %v691, %v690
        %v771 = vpack.c.bf16 %v693, %v692
        %v772 = vpack.c.bf16 %v695, %v694
        %v773 = vpack.c.bf16 %v697, %v696
        %v774 = vpack.c.bf16 %v699, %v698
        %v775 = vpack.c.bf16 %v701, %v700
        %v776 = vpack.c.bf16 %v703, %v702
        %v777 = vpack.c.bf16 %v705, %v704
        %778 = vmatpush.bf16.xpose.msra.mxu0 %v769
        %779 = vmatpush.bf16.xpose.msra.mxu0 %v768
        %780 = vmatpush.bf16.xpose.msra.mxu0 %v767
        %781 = vmatpush.bf16.xpose.msra.mxu0 %v766
        %782 = vmatpush.bf16.xpose.msra.mxu0 %v765
        %783 = vmatpush.bf16.xpose.msra.mxu0 %v764
        %784 = vmatpush.bf16.xpose.msra.mxu0 %v763
        %785 = vmatpush.bf16.xpose.msra.mxu0 %v762
        %786 = vmatmul.bf16.gmra.mxu0 %v754
        %v787 = vpop.f32.mrf.mxu0
        %v788 = vadd.f32 0.0, %v787
        %v789 = vpop.f32.mrf.mxu0
        %v790 = vadd.f32 0.0, %v789
        %791 = vmatmul.bf16.gmra.mxu0 %v755
        %v792 = vpop.f32.mrf.mxu0
        %v793 = vadd.f32 0.0, %v792
        %v794 = vpop.f32.mrf.mxu0
        %v795 = vadd.f32 0.0, %v794
        %796 = vmatmul.bf16.gmra.mxu0 %v756
        %v797 = vpop.f32.mrf.mxu0
        %v798 = vadd.f32 0.0, %v797
        %v799 = vpop.f32.mrf.mxu0
        %v800 = vadd.f32 0.0, %v799
        %801 = vmatmul.bf16.gmra.mxu0 %v757
        %v802 = vpop.f32.mrf.mxu0
        %v803 = vadd.f32 0.0, %v802
        %v804 = vpop.f32.mrf.mxu0
        %v805 = vadd.f32 0.0, %v804
        %806 = vmatmul.bf16.gmra.mxu0 %v758
        %v807 = vpop.f32.mrf.mxu0
        %v808 = vadd.f32 0.0, %v807
        %v809 = vpop.f32.mrf.mxu0
        %v810 = vadd.f32 0.0, %v809
        %811 = vmatmul.bf16.gmra.mxu0 %v759
        %v812 = vpop.f32.mrf.mxu0
        %v813 = vadd.f32 0.0, %v812
        %v814 = vpop.f32.mrf.mxu0
        %v815 = vadd.f32 0.0, %v814
        %816 = vmatmul.bf16.gmra.mxu0 %v760
        %v817 = vpop.f32.mrf.mxu0
        %v818 = vadd.f32 0.0, %v817
        %v819 = vpop.f32.mrf.mxu0
        %v820 = vadd.f32 0.0, %v819
        %821 = vmatmul.bf16.gmra.mxu0 %v761
        %v822 = vpop.f32.mrf.mxu0
        %v823 = vadd.f32 0.0, %v822
        %v824 = vpop.f32.mrf.mxu0
        %v825 = vadd.f32 0.0, %v824
        %826 = vdwg.mxu0
        %v827 = vld [vmem:[#allocation3] sm:$0xff]
        %v828 = vld [vmem:[#allocation3 + $0x8] sm:$0xff]
        %v829 = vld [vmem:[#allocation3 + $0x10] sm:$0xff]
        %v830 = vld [vmem:[#allocation3 + $0x18] sm:$0xff]
        %v831 = vld [vmem:[#allocation3 + $0x20] sm:$0xff]
        %v832 = vld [vmem:[#allocation3 + $0x28] sm:$0xff]
        %v833 = vld [vmem:[#allocation3 + $0x30] sm:$0xff]
        %v834 = vld [vmem:[#allocation3 + $0x38] sm:$0xff]
        %v835 = vld [vmem:[#allocation3 + $0x40] sm:$0xff]
        %v836 = vld [vmem:[#allocation3 + $0x48] sm:$0xff]
        %v837 = vld [vmem:[#allocation3 + $0x50] sm:$0xff]
        %v838 = vld [vmem:[#allocation3 + $0x58] sm:$0xff]
        %v839 = vld [vmem:[#allocation3 + $0x60] sm:$0xff]
        %v840 = vld [vmem:[#allocation3 + $0x68] sm:$0xff]
        %v841 = vld [vmem:[#allocation3 + $0x70] sm:$0xff]
        %v842 = vld [vmem:[#allocation3 + $0x78] sm:$0xff]
        %v843 = vmul.f32 %v788, %v827
        %v844 = vmul.f32 %v790, %v828
        %v845 = vmul.f32 %v793, %v829
        %v846 = vmul.f32 %v795, %v830
        %v847 = vmul.f32 %v798, %v831
        %v848 = vmul.f32 %v800, %v832
        %v849 = vmul.f32 %v803, %v833
        %v850 = vmul.f32 %v805, %v834
        %v851 = vmul.f32 %v808, %v835
        %v852 = vmul.f32 %v810, %v836
        %v853 = vmul.f32 %v813, %v837
        %v854 = vmul.f32 %v815, %v838
        %v855 = vmul.f32 %v818, %v839
        %v856 = vmul.f32 %v820, %v840
        %v857 = vmul.f32 %v823, %v841
        %v858 = vmul.f32 %v825, %v842
        %v859 = vpack.c.bf16 %v844, %v843
        %v860 = vpack.c.bf16 %v846, %v845
        %v861 = vpack.c.bf16 %v848, %v847
        %v862 = vpack.c.bf16 %v850, %v849
        %v863 = vpack.c.bf16 %v852, %v851
        %v864 = vpack.c.bf16 %v854, %v853
        %v865 = vpack.c.bf16 %v856, %v855
        %v866 = vpack.c.bf16 %v858, %v857
        %v867 = vpack.c.bf16 %v707, %v706
        %v868 = vpack.c.bf16 %v709, %v708
        %v869 = vpack.c.bf16 %v711, %v710
        %v870 = vpack.c.bf16 %v713, %v712
        %v871 = vpack.c.bf16 %v715, %v714
        %v872 = vpack.c.bf16 %v717, %v716
        %v873 = vpack.c.bf16 %v719, %v718
        %v874 = vpack.c.bf16 %v721, %v720
        %875 = vmatpush.bf16.msra.mxu0 %v874
        %876 = vmatpush.bf16.msra.mxu0 %v873
        %877 = vmatpush.bf16.msra.mxu0 %v872
        %878 = vmatpush.bf16.msra.mxu0 %v871
        %879 = vmatpush.bf16.msra.mxu0 %v870
        %880 = vmatpush.bf16.msra.mxu0 %v869
        %881 = vmatpush.bf16.msra.mxu0 %v868
        %882 = vmatpush.bf16.msra.mxu0 %v867
        %883 = vmatmul.bf16.gmra.mxu0 %v754
        %v884 = vpop.f32.mrf.mxu0
        %v885 = vadd.f32 0.0, %v884
        %v886 = vpop.f32.mrf.mxu0
        %v887 = vadd.f32 0.0, %v886
        %888 = vmatmul.bf16.gmra.mxu0 %v755
        %v889 = vpop.f32.mrf.mxu0
        %v890 = vadd.f32 0.0, %v889
        %v891 = vpop.f32.mrf.mxu0
        %v892 = vadd.f32 0.0, %v891
        %893 = vmatmul.bf16.gmra.mxu0 %v756
        %v894 = vpop.f32.mrf.mxu0
        %v895 = vadd.f32 0.0, %v894
        %v896 = vpop.f32.mrf.mxu0
        %v897 = vadd.f32 0.0, %v896
        %898 = vmatmul.bf16.gmra.mxu0 %v757
        %v899 = vpop.f32.mrf.mxu0
        %v900 = vadd.f32 0.0, %v899
        %v901 = vpop.f32.mrf.mxu0
        %v902 = vadd.f32 0.0, %v901
        %903 = vmatmul.bf16.gmra.mxu0 %v758
        %v904 = vpop.f32.mrf.mxu0
        %v905 = vadd.f32 0.0, %v904
        %v906 = vpop.f32.mrf.mxu0
        %v907 = vadd.f32 0.0, %v906
        %908 = vmatmul.bf16.gmra.mxu0 %v759
        %v909 = vpop.f32.mrf.mxu0
        %v910 = vadd.f32 0.0, %v909
        %v911 = vpop.f32.mrf.mxu0
        %v912 = vadd.f32 0.0, %v911
        %913 = vmatmul.bf16.gmra.mxu0 %v760
        %v914 = vpop.f32.mrf.mxu0
        %v915 = vadd.f32 0.0, %v914
        %v916 = vpop.f32.mrf.mxu0
        %v917 = vadd.f32 0.0, %v916
        %918 = vmatmul.bf16.gmra.mxu0 %v761
        %v919 = vpop.f32.mrf.mxu0
        %v920 = vadd.f32 0.0, %v919
        %v921 = vpop.f32.mrf.mxu0
        %v922 = vadd.f32 0.0, %v921
        %923 = vdwg.mxu0
        %925 = vset.pattern.permute.xlu0 0
        %926 = vperm.xlu0 %925, %v722
        %v927 = vpop.permute.xlu0 %926
        %930 = vset.pattern.permute.xlu0 0
        %931 = vperm.xlu0 %930, %v723
        %v932 = vpop.permute.xlu0 %931
        %935 = vset.pattern.permute.xlu0 0
        %936 = vperm.xlu0 %935, %v724
        %v937 = vpop.permute.xlu0 %936
        %940 = vset.pattern.permute.xlu0 0
        %941 = vperm.xlu0 %940, %v725
        %v942 = vpop.permute.xlu0 %941
        %945 = vset.pattern.permute.xlu0 0
        %946 = vperm.xlu0 %945, %v726
        %v947 = vpop.permute.xlu0 %946
        %950 = vset.pattern.permute.xlu0 0
        %951 = vperm.xlu0 %950, %v727
        %v952 = vpop.permute.xlu0 %951
        %955 = vset.pattern.permute.xlu0 0
        %956 = vperm.xlu0 %955, %v728
        %v957 = vpop.permute.xlu0 %956
        %960 = vset.pattern.permute.xlu0 0
        %961 = vperm.xlu0 %960, %v729
        %v962 = vpop.permute.xlu0 %961
        %965 = vset.pattern.permute.xlu0 0
        %966 = vperm.xlu0 %965, %v730
        %v967 = vpop.permute.xlu0 %966
        %970 = vset.pattern.permute.xlu0 0
        %971 = vperm.xlu0 %970, %v731
        %v972 = vpop.permute.xlu0 %971
        %975 = vset.pattern.permute.xlu0 0
        %976 = vperm.xlu0 %975, %v732
        %v977 = vpop.permute.xlu0 %976
        %980 = vset.pattern.permute.xlu0 0
        %981 = vperm.xlu0 %980, %v733
        %v982 = vpop.permute.xlu0 %981
        %985 = vset.pattern.permute.xlu0 0
        %986 = vperm.xlu0 %985, %v734
        %v987 = vpop.permute.xlu0 %986
        %990 = vset.pattern.permute.xlu0 0
        %991 = vperm.xlu0 %990, %v735
        %v992 = vpop.permute.xlu0 %991
        %995 = vset.pattern.permute.xlu0 0
        %996 = vperm.xlu0 %995, %v736
        %v997 = vpop.permute.xlu0 %996
        %1000 = vset.pattern.permute.xlu0 0
        %1001 = vperm.xlu0 %1000, %v737
        %v1002 = vpop.permute.xlu0 %1001
        %v1004 = vmul.f32 %v927, %v885
        %v1005 = vmul.f32 %v932, %v887
        %v1006 = vmul.f32 %v937, %v890
        %v1007 = vmul.f32 %v942, %v892
        %v1008 = vmul.f32 %v947, %v895
        %v1009 = vmul.f32 %v952, %v897
        %v1010 = vmul.f32 %v957, %v900
        %v1011 = vmul.f32 %v962, %v902
        %v1012 = vmul.f32 %v967, %v905
        %v1013 = vmul.f32 %v972, %v907
        %v1014 = vmul.f32 %v977, %v910
        %v1015 = vmul.f32 %v982, %v912
        %v1016 = vmul.f32 %v987, %v915
        %v1017 = vmul.f32 %v992, %v917
        %v1018 = vmul.f32 %v997, %v920
        %v1019 = vmul.f32 %v1002, %v922
        %1020 = vmatpush.bf16.msra.mxu0 %v777
        %1021 = vmatpush.bf16.msra.mxu0 %v776
        %1022 = vmatpush.bf16.msra.mxu0 %v775
        %1023 = vmatpush.bf16.msra.mxu0 %v774
        %1024 = vmatpush.bf16.msra.mxu0 %v773
        %1025 = vmatpush.bf16.msra.mxu0 %v772
        %1026 = vmatpush.bf16.msra.mxu0 %v771
        %1027 = vmatpush.bf16.msra.mxu0 %v770
        %1028 = vmatmul.bf16.gmra.mxu0 %v859
        %v1029 = vpop.f32.mrf.mxu0
        %v1030 = vadd.f32 %v1004, %v1029
        %v1031 = vpop.f32.mrf.mxu0
        %v1032 = vadd.f32 %v1005, %v1031
        %1033 = vmatmul.bf16.gmra.mxu0 %v860
        %v1034 = vpop.f32.mrf.mxu0
        %v1035 = vadd.f32 %v1006, %v1034
        %v1036 = vpop.f32.mrf.mxu0
        %v1037 = vadd.f32 %v1007, %v1036
        %1038 = vmatmul.bf16.gmra.mxu0 %v861
        %v1039 = vpop.f32.mrf.mxu0
        %v1040 = vadd.f32 %v1008, %v1039
        %v1041 = vpop.f32.mrf.mxu0
        %v1042 = vadd.f32 %v1009, %v1041
        %1043 = vmatmul.bf16.gmra.mxu0 %v862
        %v1044 = vpop.f32.mrf.mxu0
        %v1045 = vadd.f32 %v1010, %v1044
        %v1046 = vpop.f32.mrf.mxu0
        %v1047 = vadd.f32 %v1011, %v1046
        %1048 = vmatmul.bf16.gmra.mxu0 %v863
        %v1049 = vpop.f32.mrf.mxu0
        %v1050 = vadd.f32 %v1012, %v1049
        %v1051 = vpop.f32.mrf.mxu0
        %v1052 = vadd.f32 %v1013, %v1051
        %1053 = vmatmul.bf16.gmra.mxu0 %v864
        %v1054 = vpop.f32.mrf.mxu0
        %v1055 = vadd.f32 %v1014, %v1054
        %v1056 = vpop.f32.mrf.mxu0
        %v1057 = vadd.f32 %v1015, %v1056
        %1058 = vmatmul.bf16.gmra.mxu0 %v865
        %v1059 = vpop.f32.mrf.mxu0
        %v1060 = vadd.f32 %v1016, %v1059
        %v1061 = vpop.f32.mrf.mxu0
        %v1062 = vadd.f32 %v1017, %v1061
        %1063 = vmatmul.bf16.gmra.mxu0 %v866
        %v1064 = vpop.f32.mrf.mxu0
        %v1065 = vadd.f32 %v1018, %v1064
        %v1066 = vpop.f32.mrf.mxu0
        %v1067 = vadd.f32 %v1019, %v1066
        %1068 = vdwg.mxu0
        %1069 = vst [vmem:[%s306] sm:$0xff] %v1030
        %1070 = vst [vmem:[%s306 + $0x8] sm:$0xff] %v1032
        %1071 = vst [vmem:[%s306 + $0x10] sm:$0xff] %v1035
        %1072 = vst [vmem:[%s306 + $0x18] sm:$0xff] %v1037
        %1073 = vst [vmem:[%s306 + $0x20] sm:$0xff] %v1040
        %1074 = vst [vmem:[%s306 + $0x28] sm:$0xff] %v1042
        %1075 = vst [vmem:[%s306 + $0x30] sm:$0xff] %v1045
        %1076 = vst [vmem:[%s306 + $0x38] sm:$0xff] %v1047
        %1077 = vst [vmem:[%s306 + $0x40] sm:$0xff] %v1050
        %1078 = vst [vmem:[%s306 + $0x48] sm:$0xff] %v1052
        %1079 = vst [vmem:[%s306 + $0x50] sm:$0xff] %v1055
        %1080 = vst [vmem:[%s306 + $0x58] sm:$0xff] %v1057
        %1081 = vst [vmem:[%s306 + $0x60] sm:$0xff] %v1060
        %1082 = vst [vmem:[%s306 + $0x68] sm:$0xff] %v1062
        %1083 = vst [vmem:[%s306 + $0x70] sm:$0xff] %v1065
        %1084 = vst [vmem:[%s306 + $0x78] sm:$0xff] %v1067
        %1086 = vset.pattern.permute.xlu0 0
        %1087 = vperm.xlu0 %1086, %v738
        %v1088 = vpop.permute.xlu0 %1087
        %1091 = vset.pattern.permute.xlu0 0
        %1092 = vperm.xlu0 %1091, %v739
        %v1093 = vpop.permute.xlu0 %1092
        %1096 = vset.pattern.permute.xlu0 0
        %1097 = vperm.xlu0 %1096, %v740
        %v1098 = vpop.permute.xlu0 %1097
        %1101 = vset.pattern.permute.xlu0 0
        %1102 = vperm.xlu0 %1101, %v741
        %v1103 = vpop.permute.xlu0 %1102
        %1106 = vset.pattern.permute.xlu0 0
        %1107 = vperm.xlu0 %1106, %v742
        %v1108 = vpop.permute.xlu0 %1107
        %1111 = vset.pattern.permute.xlu0 0
        %1112 = vperm.xlu0 %1111, %v743
        %v1113 = vpop.permute.xlu0 %1112
        %1116 = vset.pattern.permute.xlu0 0
        %1117 = vperm.xlu0 %1116, %v744
        %v1118 = vpop.permute.xlu0 %1117
        %1121 = vset.pattern.permute.xlu0 0
        %1122 = vperm.xlu0 %1121, %v745
        %v1123 = vpop.permute.xlu0 %1122
        %1126 = vset.pattern.permute.xlu0 0
        %1127 = vperm.xlu0 %1126, %v746
        %v1128 = vpop.permute.xlu0 %1127
        %1131 = vset.pattern.permute.xlu0 0
        %1132 = vperm.xlu0 %1131, %v747
        %v1133 = vpop.permute.xlu0 %1132
        %1136 = vset.pattern.permute.xlu0 0
        %1137 = vperm.xlu0 %1136, %v748
        %v1138 = vpop.permute.xlu0 %1137
        %1141 = vset.pattern.permute.xlu0 0
        %1142 = vperm.xlu0 %1141, %v749
        %v1143 = vpop.permute.xlu0 %1142
        %1146 = vset.pattern.permute.xlu0 0
        %1147 = vperm.xlu0 %1146, %v750
        %v1148 = vpop.permute.xlu0 %1147
        %1151 = vset.pattern.permute.xlu0 0
        %1152 = vperm.xlu0 %1151, %v751
        %v1153 = vpop.permute.xlu0 %1152
        %1156 = vset.pattern.permute.xlu0 0
        %1157 = vperm.xlu0 %1156, %v752
        %v1158 = vpop.permute.xlu0 %1157
        %1161 = vset.pattern.permute.xlu0 0
        %1162 = vperm.xlu0 %1161, %v753
        %v1163 = vpop.permute.xlu0 %1162
        %v1165 = vmul.f32 %v1088, %v674
        %v1166 = vmul.f32 %v1093, %v675
        %v1167 = vmul.f32 %v1098, %v676
        %v1168 = vmul.f32 %v1103, %v677
        %v1169 = vmul.f32 %v1108, %v678
        %v1170 = vmul.f32 %v1113, %v679
        %v1171 = vmul.f32 %v1118, %v680
        %v1172 = vmul.f32 %v1123, %v681
        %v1173 = vmul.f32 %v1128, %v682
        %v1174 = vmul.f32 %v1133, %v683
        %v1175 = vmul.f32 %v1138, %v684
        %v1176 = vmul.f32 %v1143, %v685
        %v1177 = vmul.f32 %v1148, %v686
        %v1178 = vmul.f32 %v1153, %v687
        %v1179 = vmul.f32 %v1158, %v688
        %v1180 = vmul.f32 %v1163, %v689
        %v1181 = vpack.c.bf16 %v1166, %v1165
        %v1182 = vpack.c.bf16 %v1168, %v1167
        %v1183 = vpack.c.bf16 %v1170, %v1169
        %v1184 = vpack.c.bf16 %v1172, %v1171
        %v1185 = vpack.c.bf16 %v1174, %v1173
        %v1186 = vpack.c.bf16 %v1176, %v1175
        %v1187 = vpack.c.bf16 %v1178, %v1177
        %v1188 = vpack.c.bf16 %v1180, %v1179
        %1189 = vxpose.xlu0.c.b16.start [1/8] %v1181, 128
        %1190 = vxpose.xlu0.c.b16.cont [2/8] %v1182, 128
        %1191 = vxpose.xlu0.c.b16.cont [3/8] %v1183, 128
        %1192 = vxpose.xlu0.c.b16.cont [4/8] %v1184, 128
        %1193 = vxpose.xlu0.c.b16.cont [5/8] %v1185, 128
        %1194 = vxpose.xlu0.c.b16.cont [6/8] %v1186, 128
        %1195 = vxpose.xlu0.c.b16.cont [7/8] %v1187, 128
        %1196 = vxpose.xlu0.c.b16.end [8/8] %v1188, 128
        %v1197 = vpop.trf.xlu0
        %v1198 = vpop.trf.xlu0
        %v1199 = vpop.trf.xlu0
        %v1200 = vpop.trf.xlu0
        %v1201 = vpop.trf.xlu0
        %v1202 = vpop.trf.xlu0
        %v1203 = vpop.trf.xlu0
        %v1204 = vpop.trf.xlu0
        %1205 = vmatpush.bf16.msra.mxu0 %v777
        %1206 = vmatpush.bf16.msra.mxu0 %v776
        %1207 = vmatpush.bf16.msra.mxu0 %v775
        %1208 = vmatpush.bf16.msra.mxu0 %v774
        %1209 = vmatpush.bf16.msra.mxu0 %v773
        %1210 = vmatpush.bf16.msra.mxu0 %v772
        %1211 = vmatpush.bf16.msra.mxu0 %v771
        %1212 = vmatpush.bf16.msra.mxu0 %v770
        %1213 = vmatmul.bf16.gmra.mxu0 %v1197
        %v1214 = vpop.f32.mrf.mxu0
        %v1215 = vadd.f32 0.0, %v1214
        %v1216 = vpop.f32.mrf.mxu0
        %v1217 = vadd.f32 0.0, %v1216
        %1218 = vmatmul.bf16.gmra.mxu0 %v1198
        %v1219 = vpop.f32.mrf.mxu0
        %v1220 = vadd.f32 0.0, %v1219
        %v1221 = vpop.f32.mrf.mxu0
        %v1222 = vadd.f32 0.0, %v1221
        %1223 = vmatmul.bf16.gmra.mxu0 %v1199
        %v1224 = vpop.f32.mrf.mxu0
        %v1225 = vadd.f32 0.0, %v1224
        %v1226 = vpop.f32.mrf.mxu0
        %v1227 = vadd.f32 0.0, %v1226
        %1228 = vmatmul.bf16.gmra.mxu0 %v1200
        %v1229 = vpop.f32.mrf.mxu0
        %v1230 = vadd.f32 0.0, %v1229
        %v1231 = vpop.f32.mrf.mxu0
        %v1232 = vadd.f32 0.0, %v1231
        %1233 = vmatmul.bf16.gmra.mxu0 %v1201
        %v1234 = vpop.f32.mrf.mxu0
        %v1235 = vadd.f32 0.0, %v1234
        %v1236 = vpop.f32.mrf.mxu0
        %v1237 = vadd.f32 0.0, %v1236
        %1238 = vmatmul.bf16.gmra.mxu0 %v1202
        %v1239 = vpop.f32.mrf.mxu0
        %v1240 = vadd.f32 0.0, %v1239
        %v1241 = vpop.f32.mrf.mxu0
        %v1242 = vadd.f32 0.0, %v1241
        %1243 = vmatmul.bf16.gmra.mxu0 %v1203
        %v1244 = vpop.f32.mrf.mxu0
        %v1245 = vadd.f32 0.0, %v1244
        %v1246 = vpop.f32.mrf.mxu0
        %v1247 = vadd.f32 0.0, %v1246
        %1248 = vmatmul.bf16.gmra.mxu0 %v1204
        %v1249 = vpop.f32.mrf.mxu0
        %v1250 = vadd.f32 0.0, %v1249
        %v1251 = vpop.f32.mrf.mxu0
        %v1252 = vadd.f32 0.0, %v1251
        %1253 = vdwg.mxu0
        %v1254 = vld [vmem:[#allocation5] sm:$0x1]
        %s1256 = vtos %v1254
        %v1257 = vstv %s1256
        %v1259 = vmul.f32 %v1257, %v706
        %v1260 = vmul.f32 %v1257, %v707
        %v1261 = vmul.f32 %v1257, %v708
        %v1262 = vmul.f32 %v1257, %v709
        %v1263 = vmul.f32 %v1257, %v710
        %v1264 = vmul.f32 %v1257, %v711
        %v1265 = vmul.f32 %v1257, %v712
        %v1266 = vmul.f32 %v1257, %v713
        %v1267 = vmul.f32 %v1257, %v714
        %v1268 = vmul.f32 %v1257, %v715
        %v1269 = vmul.f32 %v1257, %v716
        %v1270 = vmul.f32 %v1257, %v717
        %v1271 = vmul.f32 %v1257, %v718
        %v1272 = vmul.f32 %v1257, %v719
        %v1273 = vmul.f32 %v1257, %v720
        %v1274 = vmul.f32 %v1257, %v721
        %v1275 = vadd.f32 %v1259, %v1215
        %v1276 = vadd.f32 %v1260, %v1217
        %v1277 = vadd.f32 %v1261, %v1220
        %v1278 = vadd.f32 %v1262, %v1222
        %v1279 = vadd.f32 %v1263, %v1225
        %v1280 = vadd.f32 %v1264, %v1227
        %v1281 = vadd.f32 %v1265, %v1230
        %v1282 = vadd.f32 %v1266, %v1232
        %v1283 = vadd.f32 %v1267, %v1235
        %v1284 = vadd.f32 %v1268, %v1237
        %v1285 = vadd.f32 %v1269, %v1240
        %v1286 = vadd.f32 %v1270, %v1242
        %v1287 = vadd.f32 %v1271, %v1245
        %v1288 = vadd.f32 %v1272, %v1247
        %v1289 = vadd.f32 %v1273, %v1250
        %v1290 = vadd.f32 %v1274, %v1252
        %1291 = vst [vmem:[#allocation2] sm:$0xff] %v1275
        %1292 = vst [vmem:[#allocation2 + $0x8] sm:$0xff] %v1276
        %1293 = vst [vmem:[#allocation2 + $0x10] sm:$0xff] %v1277
        %1294 = vst [vmem:[#allocation2 + $0x18] sm:$0xff] %v1278
        %1295 = vst [vmem:[#allocation2 + $0x20] sm:$0xff] %v1279
        %1296 = vst [vmem:[#allocation2 + $0x28] sm:$0xff] %v1280
        %1297 = vst [vmem:[#allocation2 + $0x30] sm:$0xff] %v1281
        %1298 = vst [vmem:[#allocation2 + $0x38] sm:$0xff] %v1282
        %1299 = vst [vmem:[#allocation2 + $0x40] sm:$0xff] %v1283
        %1300 = vst [vmem:[#allocation2 + $0x48] sm:$0xff] %v1284
        %1301 = vst [vmem:[#allocation2 + $0x50] sm:$0xff] %v1285
        %1302 = vst [vmem:[#allocation2 + $0x58] sm:$0xff] %v1286
        %1303 = vst [vmem:[#allocation2 + $0x60] sm:$0xff] %v1287
        %1304 = vst [vmem:[#allocation2 + $0x68] sm:$0xff] %v1288
        %1305 = vst [vmem:[#allocation2 + $0x70] sm:$0xff] %v1289
        %1306 = vst [vmem:[#allocation2 + $0x78] sm:$0xff] %v1290
        %s1307 = sand.u32 %s138, 1
        %s1308 = scalar_lea.sflag [#allocation10], %s1307
        %s1309 = sand.u32 %s138, 1
        %s1310 = smul.addr %s1309, 128
        %s1311 = scalar_lea.vmem [#allocation14], %s1310
        // Predicated region
        $region49: #{lightning_attention.1} parent=31 // pred_check
          %p1312 = pneg %p148
        $region50: #{lightning_attention.1} parent=31 // pred_check_branch
          %1314 = sbr.rel (%p1312) target = $region52
        $region51: #{lightning_attention.1} parent=31 // pred_region
          %s1315 = smul.u32 16, %s37
          %1317 = vsyncadd %s1308, 0
          %s1318 = smul.addr %s36, 32
          %s1319 = sadd.s32 %s1315, %s1318
          %s1320 = smul.addr %s1319, 8
          %s1321 = scalar_lea.hbm %s4, %s1320
          %s1322 = sshll.u32 %s1311, 4
          %s1323 = int_to_ptr.vmem [resolvable:$true] %s1322
          %s1324 = sshll.u32 %s1321, 4
          %s1325 = int_to_ptr.hbm [resolvable:$true] %s1324
          %1330 = dma.vmem_to_hbm [thread:$0]  %s1323, 2048, %s1325, %s1308, 128, 128, 8
        $region52: #{lightning_attention.1} parent=31 // pred_fallthru
          _
      $region32: #{lightning_attention.1} parent=5 // pred_fallthru
        _
      %p1331 = scmp.le.s32.totalorder 2, %s27
      // Predicated region
      $region53: #{lightning_attention.1} parent=5 // pred_check
        %p1332 = pneg %p1331
      $region54: #{lightning_attention.1} parent=5 // pred_check_branch
        %1334 = sbr.rel (%p1332) target = $region56
      $region55: #{lightning_attention.1} parent=5 // pred_region
        %s1335 = ssub.s32 %s27, 2
        // Predicated region
        $region57: #{lightning_attention.1} parent=55 // pred_check
          %p1336 = pneg %p154
        $region58: #{lightning_attention.1} parent=55 // pred_check_branch
          %1338 = sbr.rel (%p1336) target = $region60
        $region59: #{lightning_attention.1} parent=55 // pred_region
          %s1339 = sand.u32 %s139, 1
          %s1340 = scalar_lea.sflag [#allocation10], %s1339
          %s1341 = sand.u32 %s139, 1
          %s1342 = smul.addr %s1341, 128
          %s1343 = scalar_lea.vmem [#allocation14], %s1342
          %1345 = dma.done %s1340, 2048
        $region60: #{lightning_attention.1} parent=55 // pred_fallthru
          _
      $region56: #{lightning_attention.1} parent=5 // pred_fallthru
        _
    $region6: #{lightning_attention.1} parent=1 // loop_footer
      %s31 = sadd.s32 1, %s27
    $region7: #{lightning_attention.1} parent=1 // loop_footer_branch
      %26 = sbr.rel target = $region3
    $region8: #{lightning_attention.1} parent=1 // loop_exit
      _
    %1346 = vsyncpa [#allocation9], 1
    %s1347 = scalar_lea.sflag [#allocation9], 1
    %1348 = vsyncpa %s1347, 1
    %1349 = vsyncpa [#allocation12], 1
    %s1350 = scalar_lea.sflag [#allocation12], 1
    %1351 = vsyncpa %s1350, 1
    %1352 = vsyncpa [#allocation10], 1
    %s1353 = scalar_lea.sflag [#allocation10], 1
    %1354 = vsyncpa %s1353, 1

</llo_original>
